<compile_context>
chip_gen: v6e
topology: v6e:2x2x1
jax: 0.10.0
libtpu: 0.0.40
codegen_flags: <defaults>
</compile_context>

<pallas_src>
import functools
import math

import jax
import jax.numpy as jnp
from jax.experimental import pallas as pl
from jax.experimental.pallas import tpu as pltpu


# ----------------------------- helpers --------------------------------------

def _round_up(n, m):
    return ((n + m - 1) // m) * m


def _pad2(a, shape):
    return jnp.pad(a, [(0, s - d) for s, d in zip(shape, a.shape)])


def _choose_tile_t(T, B_pad, H_pad, O_pad, max_tile=128, vmem_budget=16 << 20):
    """VMEM-budgeted time tile.  Never degenerates to tile_T=1 for awkward T:
    if no decent divisor of T exists we return the cap and the caller pads T
    (padded steps are masked inside the kernel)."""
    # Streaming bytes per timestep: xproj0 f32 (double-buffered) + y f32
    # (double-buffered) + hseq bf16 scratch.
    per_t = B_pad * (H_pad * 4 * 2 + O_pad * 4 * 2 + H_pad * 2)
    cap = max(1, min(max_tile, vmem_budget // max(per_t, 1)))
    if T <= cap:
        return T
    best = 1
    for cand in range(cap, 0, -1):
        if T % cand == 0:
            best = cand
            break
    if best >= max(1, cap // 2):
        return best
    return cap            # caller pads T up to a multiple of this


def _choose_b_block(B_pad):
    """Split the (padded) batch in two when large enough so the leading
    'parallel' grid axis can shard across v7x's two TensorCores."""
    if B_pad >= 32:
        half = _round_up(B_pad // 2, 16)
        if B_pad % half == 0:
            return half
    return B_pad


# ----------------------------- fused Pallas kernel ---------------------------

def _make_fused_kernel(n_layers, tile_T, T_real, T_pad):
    """Fused n_layers-RNN + FC head kernel over one (batch-block, time-tile).

    Ref order: xproj0, w_hh[0], (w_ih[l], w_hh[l], b[l] for l=1..L-1),
               w_fc, b_fc, y_out, hlast_out, h_carry_scratch, (hseq_scratch).
    """
    need_mask = (T_pad != T_real)

    def kernel(*refs):
        it = iter(refs)
        xproj0_ref = next(it)                    # (tile_T, Bb, H) f32
        w_hh_refs = [None] * n_layers
        w_ih_refs = [None] * n_layers
        b_refs = [None] * n_layers
        w_hh_refs[0] = next(it)                  # (H, H) bf16
        for l in range(1, n_layers):
            w_ih_refs[l] = next(it)              # (H, H) bf16
            w_hh_refs[l] = next(it)              # (H, H) bf16
            b_refs[l] = next(it)                 # (1, H) f32
        w_fc_ref = next(it)                      # (H, O) bf16
        b_fc_ref = next(it)                      # (1, O) f32
        y_ref = next(it)                         # (tile_T, Bb, O) f32
        hlast_ref = next(it)                     # (L, Bb, H) f32
        h_carry_ref = next(it)                   # (L, Bb, H) f32 scratch
        hseq_ref = next(it) if n_layers > 1 else None  # (tile_T, Bb, H) bf16

        t_tile = pl.program_id(1)
        Bb = y_ref.shape[1]
        H = w_hh_refs[0].shape[1]

        @pl.when(t_tile == 0)
        def _():
            h_carry_ref[...] = jnp.zeros_like(h_carry_ref)

        w_fc = w_fc_ref[...]
        b_fc = b_fc_ref[...]

        for l in range(n_layers):
            last_layer = (l == n_layers - 1)
            w_hh_l = w_hh_refs[l][...]           # load once, reuse in loop

            if l == 0:
                # Layer-0 input projection was hoisted into the wrapper.
                xproj = xproj0_ref[...]
            else:
                # Hoisted per-tile input projection for layer l: one big GEMM
                # over the previous layer's hidden sequence (kept in VMEM).
                hs = hseq_ref[...].reshape(tile_T * Bb, H)
                xproj = (jnp.dot(hs, w_ih_refs[l][...],
                                 preferred_element_type=jnp.float32)
                         .reshape(tile_T, Bb, H) + b_refs[l][...])

            h = h_carry_ref[l]                   # f32 carry
            h_bf = h.astype(jnp.bfloat16)        # single bf16 copy, reused
            for t in range(tile_T):              # static -> fully unrolled
                pre = xproj[t] + jnp.dot(h_bf, w_hh_l,
                                         preferred_element_type=jnp.float32)
                h_new = jnp.tanh(pre)
                if need_mask:
                    # Padded timesteps must not touch h (bias alone would
                    # otherwise perturb it).
                    h = jnp.where((t_tile * tile_T + t) < T_real, h_new, h)
                else:
                    h = h_new
                h_bf = h.astype(jnp.bfloat16)    # one cast per step, reused
                if last_layer:
                    # FC head interleaved into the recurrence bubbles.
                    y_ref[t] = (jnp.dot(h_bf, w_fc,
                                        preferred_element_type=jnp.float32)
                                + b_fc)
                else:
                    hseq_ref[t] = h_bf
            h_carry_ref[l] = h

        @pl.when(t_tile == pl.num_programs(1) - 1)
        def _():
            hlast_ref[...] = h_carry_ref[...]

    return kernel


def _fused_rnn_fc(xproj0, layer_ws, w_fc_t, b_fc, tile_T, b_block, T_real):
    T_pad, B_pad, H = xproj0.shape
    O = w_fc_t.shape[1]
    L = len(layer_ws)
    n_b = B_pad // b_block
    n_t = T_pad // tile_T

    # NOTE: constant-index weight blocks could be single-buffered
    # (pipeline_mode=pl.Buffered(1)) to save VMEM for very large H; left
    # default here since the weights are small relative to the tiles.
    in_specs = [pl.BlockSpec((tile_T, b_block, H), lambda b, t: (t, b, 0))]
    args = [xproj0]
    in_specs.append(pl.BlockSpec((H, H), lambda b, t: (0, 0)))
    args.append(layer_ws[0]["w_hh_t"])
    for lp in layer_ws[1:]:
        in_specs += [pl.BlockSpec((H, H), lambda b, t: (0, 0)),
                     pl.BlockSpec((H, H), lambda b, t: (0, 0)),
                     pl.BlockSpec((1, H), lambda b, t: (0, 0))]
        args += [lp["w_ih_t"], lp["w_hh_t"], lp["b"]]
    in_specs += [pl.BlockSpec((H, O), lambda b, t: (0, 0)),
                 pl.BlockSpec((1, O), lambda b, t: (0, 0))]
    args += [w_fc_t, b_fc]

    out_specs = (pl.BlockSpec((tile_T, b_block, O), lambda b, t: (t, b, 0)),
                 pl.BlockSpec((L, b_block, H), lambda b, t: (0, b, 0)))
    out_shape = (jax.ShapeDtypeStruct((T_pad, B_pad, O), jnp.float32),
                 jax.ShapeDtypeStruct((L, B_pad, H), jnp.float32))

    scratch = [pltpu.VMEM((L, b_block, H), jnp.float32)]
    if L > 1:
        scratch.append(pltpu.VMEM((tile_T, b_block, H), jnp.bfloat16))

    kernel = _make_fused_kernel(L, tile_T, T_real, T_pad)

    return pl.pallas_call(
        kernel,
        out_shape=out_shape,
        grid_spec=pltpu.PrefetchScalarGridSpec(
            num_scalar_prefetch=0,
            grid=(n_b, n_t),
            in_specs=in_specs,
            out_specs=out_specs,
            scratch_shapes=scratch),
        compiler_params=pltpu.CompilerParams(
            dimension_semantics=("parallel", "arbitrary"),
            vmem_limit_bytes=48 * 1024 * 1024),
    )(*args)


# ----------------------------- Model wrapper ---------------------------------

def init_params(key, input_size, output_size, hidden_dim, n_layers):
    """PyTorch-style U(-1/sqrt(H), 1/sqrt(H)) init, torch weight layout."""
    params = {"rnn": [], "fc": {}}
    bound = 1.0 / math.sqrt(hidden_dim)
    for layer in range(n_layers):
        in_sz = input_size if layer == 0 else hidden_dim
        key, k1, k2, k3, k4 = jax.random.split(key, 5)
        params["rnn"].append({
            "w_ih": jax.random.uniform(k1, (hidden_dim, in_sz), jnp.float32, -bound, bound),
            "w_hh": jax.random.uniform(k2, (hidden_dim, hidden_dim), jnp.float32, -bound, bound),
            "b_ih": jax.random.uniform(k3, (hidden_dim,), jnp.float32, -bound, bound),
            "b_hh": jax.random.uniform(k4, (hidden_dim,), jnp.float32, -bound, bound),
        })
    key, k1, k2 = jax.random.split(key, 3)
    params["fc"] = {
        "w": jax.random.uniform(k1, (output_size, hidden_dim), jnp.float32, -bound, bound),
        "b": jax.random.uniform(k2, (output_size,), jnp.float32, -bound, bound),
    }
    return params


def prepare_params(params):
    """Pre-transpose, zero-pad to (·,128)-aligned shapes, cast to bf16 (once)."""
    layers = []
    for lp in params["rnn"]:
        H, In = lp["w_ih"].shape
        I_pad, H_pad = _round_up(In, 128), _round_up(H, 128)
        layers.append({
            "w_ih_t": _pad2(lp["w_ih"].T, (I_pad, H_pad)).astype(jnp.bfloat16),
            "w_hh_t": _pad2(lp["w_hh"].T, (H_pad, H_pad)).astype(jnp.bfloat16),
            "b": _pad2((lp["b_ih"] + lp["b_hh"]).reshape(1, -1),
                       (1, H_pad)).astype(jnp.float32),
        })
    O, H = params["fc"]["w"].shape
    H_pad, O_pad = _round_up(H, 128), _round_up(O, 128)
    return {
        "layers": layers,
        "fc_w_t": _pad2(params["fc"]["w"].T, (H_pad, O_pad)).astype(jnp.bfloat16),
        "fc_b": _pad2(params["fc"]["b"].reshape(1, -1), (1, O_pad)).astype(jnp.float32),
    }


@functools.partial(jax.jit,
                   static_argnames=("hidden_dim", "output_size", "max_tile_t"))
def forward(prep, x, *, hidden_dim, output_size, max_tile_t=128):
    """x: (B, T, input_size) f32. Returns (out, hidden):
       out:    (B, T, output_size)
       hidden: (n_layers, B, hidden_dim)"""
    B, T, In = x.shape
    lp0 = prep["layers"][0]
    I_pad, H_pad = lp0["w_ih_t"].shape
    O_pad = prep["fc_w_t"].shape[1]
    B_pad = _round_up(B, 16)
    b_block = _choose_b_block(B_pad)
    tile_T = _choose_tile_t(T, B_pad, H_pad, O_pad, max_tile=max_tile_t)
    T_pad = _round_up(T, tile_T)

    # ---- hoisted layer-0 input projection: one fully-parallel GEMM ----------
    x_p = jnp.pad(x, ((0, 0), (0, 0), (0, I_pad - In))).astype(jnp.bfloat16)
    xproj0 = (jnp.dot(x_p.reshape(B * T, I_pad), lp0["w_ih_t"],
                      preferred_element_type=jnp.float32) + lp0["b"])
    xproj0 = xproj0.reshape(B, T, H_pad).transpose(1, 0, 2)      # time-major
    xproj0 = jnp.pad(xproj0, ((0, T_pad - T), (0, B_pad - B), (0, 0)))

    # ---- single fused kernel: all RNN layers + FC head ----------------------
    y_pad, h_last = _fused_rnn_fc(xproj0, prep["layers"], prep["fc_w_t"],
                                  prep["fc_b"], tile_T, b_block, T)

    out = jnp.transpose(y_pad[:T, :B, :output_size], (1, 0, 2))   # (B, T, O)
    hidden = h_last[:, :B, :hidden_dim]                           # (L, B, H)
    return out, hidden


# --------------------------- pure-JAX reference ------------------------------

def forward_reference(params, x):
    """Mirrors the kernel's bf16-operand / f32-accumulate arithmetic."""
    def mm(a, b):
        return jnp.dot(a.astype(jnp.bfloat16), b.astype(jnp.bfloat16),
                       preferred_element_type=jnp.float32)

    x_tm = jnp.transpose(x, (1, 0, 2)).astype(jnp.float32)
    T, B, _ = x_tm.shape
    h_lasts = []
    layer_in = x_tm
    outs = None
    for lp in params["rnn"]:
        H = lp["w_hh"].shape[0]
        w_ih_t, w_hh_t = lp["w_ih"].T, lp["w_hh"].T
        b = (lp["b_ih"] + lp["b_hh"]).astype(jnp.float32)
        h = jnp.zeros((B, H), jnp.float32)
        outs = []
        for t in range(T):
            pre = (mm(layer_in[t], w_ih_t) + b) + mm(h, w_hh_t)
            h = jnp.tanh(pre)
            outs.append(h)
        h_lasts.append(h)                       # f32 carry, all layers
        layer_in = jnp.stack(outs, 0)           # mm() re-casts to bf16
    hidden = jnp.stack(h_lasts, 0)
    hs = jnp.stack(outs, 0)
    y = mm(hs.reshape(T * B, -1), params["fc"]["w"].T) + params["fc"]["b"]
    out = jnp.transpose(y.reshape(T, B, -1), (1, 0, 2))
    return out, hidden


# --------------------------------- main ---------------------------------------

if __name__ == "__main__":
    input_size, output_size, hidden_dim, n_layers = 16, 8, 32, 2
    batch, seq = 10, 8

    key = jax.random.PRNGKey(0)
    key, pk, xk = jax.random.split(key, 3)
    params = init_params(pk, input_size, output_size, hidden_dim, n_layers)
    x = jax.random.normal(xk, (batch, seq, input_size), jnp.float32)

    prep = prepare_params(params)
    out, hidden = forward(prep, x, hidden_dim=hidden_dim, output_size=output_size)
    out = jax.block_until_ready(out)
    hidden = jax.block_until_ready(hidden)

    ref_out, ref_hidden = forward_reference(params, x)
    assert out.shape == (batch, seq, output_size)
    assert hidden.shape == (n_layers, batch, hidden_dim)
    assert jnp.allclose(out, ref_out, atol=2e-3, rtol=2e-3), \
        float(jnp.max(jnp.abs(out - ref_out)))
    assert jnp.allclose(hidden, ref_hidden, atol=2e-3, rtol=2e-3), \
        float(jnp.max(jnp.abs(hidden - ref_hidden)))

    # Second case: awkward T with a small forced tile exercises the padded-time
    # masked-step path and the hidden-state carry across multiple grid steps.
    key, xk2 = jax.random.split(key)
    x2 = jax.random.normal(xk2, (3, 7, input_size), jnp.float32)
    out2, hidden2 = forward(prep, x2, hidden_dim=hidden_dim,
                            output_size=output_size, max_tile_t=4)
    out2 = jax.block_until_ready(out2)
    hidden2 = jax.block_until_ready(hidden2)
    ref_out2, ref_hidden2 = forward_reference(params, x2)
    assert jnp.allclose(out2, ref_out2, atol=2e-3, rtol=2e-3), \
        float(jnp.max(jnp.abs(out2 - ref_out2)))
    assert jnp.allclose(hidden2, ref_hidden2, atol=2e-3, rtol=2e-3), \
        float(jnp.max(jnp.abs(hidden2 - ref_hidden2)))

    print("KERNEL_OK")
</pallas_src>

<mosaic_0001>
module attributes {stable_mosaic.version = 11 : i64} {
  func.func @kernel(%arg0: i32, %arg1: i32, %arg2: memref<8x16x128xf32, #tpu.memory_space<vmem>>, %arg3: memref<128x128xbf16, #tpu.memory_space<vmem>>, %arg4: memref<128x128xbf16, #tpu.memory_space<vmem>>, %arg5: memref<128x128xbf16, #tpu.memory_space<vmem>>, %arg6: memref<1x128xf32, #tpu.memory_space<vmem>>, %arg7: memref<128x128xbf16, #tpu.memory_space<vmem>>, %arg8: memref<1x128xf32, #tpu.memory_space<vmem>>, %arg9: memref<8x16x128xf32, #tpu.memory_space<vmem>>, %arg10: memref<2x16x128xf32, #tpu.memory_space<vmem>>, %arg11: memref<2x16x128xf32, #tpu.memory_space<vmem>>, %arg12: memref<8x16x128xbf16, #tpu.memory_space<vmem>>) attributes {dimension_semantics = [#tpu.dimension_semantics<parallel>, #tpu.dimension_semantics<arbitrary>], iteration_bounds = array<i64: 1, 1>, scalar_prefetch = 0 : i64, scratch_operands = 2 : i64, tpu.core_type = #tpu.core_type<tc>, window_params = [{transform_indices = @transform_0, window_bounds = array<i64: 8, 16, 128>}, {pipeline_mode = #tpu.pipeline_mode<synchronous>, transform_indices = @transform_1, window_bounds = array<i64: 128, 128>}, {pipeline_mode = #tpu.pipeline_mode<synchronous>, transform_indices = @transform_2, window_bounds = array<i64: 128, 128>}, {pipeline_mode = #tpu.pipeline_mode<synchronous>, transform_indices = @transform_3, window_bounds = array<i64: 128, 128>}, {pipeline_mode = #tpu.pipeline_mode<synchronous>, transform_indices = @transform_4, window_bounds = array<i64: 1, 128>}, {pipeline_mode = #tpu.pipeline_mode<synchronous>, transform_indices = @transform_5, window_bounds = array<i64: 128, 128>}, {pipeline_mode = #tpu.pipeline_mode<synchronous>, transform_indices = @transform_6, window_bounds = array<i64: 1, 128>}, {transform_indices = @transform_7, window_bounds = array<i64: 8, 16, 128>}, {transform_indices = @transform_8, window_bounds = array<i64: 2, 16, 128>}]} {
    %c0_i32 = arith.constant 0 : i32
    %0 = arith.cmpi eq, %arg1, %c0_i32 : i32
    %1 = arith.extui %0 : i1 to i32
    %c0_i32_0 = arith.constant 0 : i32
    %2 = arith.cmpi ne, %1, %c0_i32_0 : i32
    scf.if %2 {
      %cst_97 = arith.constant 0.000000e+00 : f32
      %200 = vector.broadcast %cst_97 : f32 to vector<2x16x128xf32>
      %c0_98 = arith.constant 0 : index
      %c0_99 = arith.constant 0 : index
      %c0_100 = arith.constant 0 : index
      %201 = vector.load %arg11[%c0_98, %c0_99, %c0_100] : memref<2x16x128xf32, #tpu.memory_space<vmem>>, vector<2x16x128xf32>
      tpu.vector_store %arg11[%c0_98, %c0_99, %c0_100], %200 {strides = array<i32>} : memref<2x16x128xf32, #tpu.memory_space<vmem>>, vector<2x16x128xf32>,
    } else {
    }
    %c0 = arith.constant 0 : index
    %c0_1 = arith.constant 0 : index
    %3 = vector.load %arg7[%c0, %c0_1] : memref<128x128xbf16, #tpu.memory_space<vmem>>, vector<128x128xbf16>
    %c0_2 = arith.constant 0 : index
    %c0_3 = arith.constant 0 : index
    %4 = vector.load %arg8[%c0_2, %c0_3] : memref<1x128xf32, #tpu.memory_space<vmem>>, vector<1x128xf32>
    %c0_4 = arith.constant 0 : index
    %c0_5 = arith.constant 0 : index
    %5 = vector.load %arg3[%c0_4, %c0_5] : memref<128x128xbf16, #tpu.memory_space<vmem>>, vector<128x128xbf16>
    %c0_6 = arith.constant 0 : index
    %c0_7 = arith.constant 0 : index
    %c0_8 = arith.constant 0 : index
    %6 = vector.load %arg2[%c0_6, %c0_7, %c0_8] : memref<8x16x128xf32, #tpu.memory_space<vmem>>, vector<8x16x128xf32>
    %c0_9 = arith.constant 0 : index
    %c0_10 = arith.constant 0 : index
    %c0_11 = arith.constant 0 : index
    %7 = vector.load %arg11[%c0_9, %c0_10, %c0_11] : memref<2x16x128xf32, #tpu.memory_space<vmem>>, vector<1x16x128xf32>
    %8 = vector.shape_cast %7 : vector<1x16x128xf32> to vector<16x128xf32>
    %9 = arith.truncf %8 : vector<16x128xf32> to vector<16x128xbf16>
    %10 = vector.extract_strided_slice %6 {offsets = [0, 0, 0], sizes = [1, 16, 128], strides = [1, 1, 1]} : vector<8x16x128xf32> to vector<1x16x128xf32>
    %11 = vector.shape_cast %10 : vector<1x16x128xf32> to vector<16x128xf32>
    %cst = arith.constant dense<0.000000e+00> : vector<16x128xf32>
    %12 = tpu.matmul %9, %5, %cst {dimension_numbers = #tpu.dot_dimension_numbers<[1], [0], [0], [1], [0, 0, 1, 1], [], []>} : vector<16x128xbf16>, vector<128x128xbf16>, vector<16x128xf32> -> vector<16x128xf32>
    %13 = arith.addf %11, %12 : vector<16x128xf32>
    %14 = math.tanh %13 : vector<16x128xf32>
    %15 = arith.truncf %14 : vector<16x128xf32> to vector<16x128xbf16>
    %c0_12 = arith.constant 0 : index
    %c0_13 = arith.constant 0 : index
    %c0_14 = arith.constant 0 : index
    %16 = vector.load %arg12[%c0_12, %c0_13, %c0_14] : memref<8x16x128xbf16, #tpu.memory_space<vmem>>, vector<1x16x128xbf16>
    %17 = vector.shape_cast %16 : vector<1x16x128xbf16> to vector<16x128xbf16>
    %18 = vector.shape_cast %15 : vector<16x128xbf16> to vector<1x16x128xbf16>
    tpu.vector_store %arg12[%c0_12, %c0_13, %c0_14], %18 {strides = array<i32>} : memref<8x16x128xbf16, #tpu.memory_space<vmem>>, vector<1x16x128xbf16>,
    %19 = vector.extract_strided_slice %6 {offsets = [1, 0, 0], sizes = [1, 16, 128], strides = [1, 1, 1]} : vector<8x16x128xf32> to vector<1x16x128xf32>
    %20 = vector.shape_cast %19 : vector<1x16x128xf32> to vector<16x128xf32>
    %cst_15 = arith.constant dense<0.000000e+00> : vector<16x128xf32>
    %21 = tpu.matmul %15, %5, %cst_15 {dimension_numbers = #tpu.dot_dimension_numbers<[1], [0], [0], [1], [0, 0, 1, 1], [], []>} : vector<16x128xbf16>, vector<128x128xbf16>, vector<16x128xf32> -> vector<16x128xf32>
    %22 = arith.addf %20, %21 : vector<16x128xf32>
    %23 = math.tanh %22 : vector<16x128xf32>
    %24 = arith.truncf %23 : vector<16x128xf32> to vector<16x128xbf16>
    %c1 = arith.constant 1 : index
    %c0_16 = arith.constant 0 : index
    %c0_17 = arith.constant 0 : index
    %25 = vector.load %arg12[%c1, %c0_16, %c0_17] : memref<8x16x128xbf16, #tpu.memory_space<vmem>>, vector<1x16x128xbf16>
    %26 = vector.shape_cast %25 : vector<1x16x128xbf16> to vector<16x128xbf16>
    %27 = vector.shape_cast %24 : vector<16x128xbf16> to vector<1x16x128xbf16>
    tpu.vector_store %arg12[%c1, %c0_16, %c0_17], %27 {strides = array<i32>} : memref<8x16x128xbf16, #tpu.memory_space<vmem>>, vector<1x16x128xbf16>,
    %28 = vector.extract_strided_slice %6 {offsets = [2, 0, 0], sizes = [1, 16, 128], strides = [1, 1, 1]} : vector<8x16x128xf32> to vector<1x16x128xf32>
    %29 = vector.shape_cast %28 : vector<1x16x128xf32> to vector<16x128xf32>
    %cst_18 = arith.constant dense<0.000000e+00> : vector<16x128xf32>
    %30 = tpu.matmul %24, %5, %cst_18 {dimension_numbers = #tpu.dot_dimension_numbers<[1], [0], [0], [1], [0, 0, 1, 1], [], []>} : vector<16x128xbf16>, vector<128x128xbf16>, vector<16x128xf32> -> vector<16x128xf32>
    %31 = arith.addf %29, %30 : vector<16x128xf32>
    %32 = math.tanh %31 : vector<16x128xf32>
    %33 = arith.truncf %32 : vector<16x128xf32> to vector<16x128xbf16>
    %c2 = arith.constant 2 : index
    %c0_19 = arith.constant 0 : index
    %c0_20 = arith.constant 0 : index
    %34 = vector.load %arg12[%c2, %c0_19, %c0_20] : memref<8x16x128xbf16, #tpu.memory_space<vmem>>, vector<1x16x128xbf16>
    %35 = vector.shape_cast %34 : vector<1x16x128xbf16> to vector<16x128xbf16>
    %36 = vector.shape_cast %33 : vector<16x128xbf16> to vector<1x16x128xbf16>
    tpu.vector_store %arg12[%c2, %c0_19, %c0_20], %36 {strides = array<i32>} : memref<8x16x128xbf16, #tpu.memory_space<vmem>>, vector<1x16x128xbf16>,
    %37 = vector.extract_strided_slice %6 {offsets = [3, 0, 0], sizes = [1, 16, 128], strides = [1, 1, 1]} : vector<8x16x128xf32> to vector<1x16x128xf32>
    %38 = vector.shape_cast %37 : vector<1x16x128xf32> to vector<16x128xf32>
    %cst_21 = arith.constant dense<0.000000e+00> : vector<16x128xf32>
    %39 = tpu.matmul %33, %5, %cst_21 {dimension_numbers = #tpu.dot_dimension_numbers<[1], [0], [0], [1], [0, 0, 1, 1], [], []>} : vector<16x128xbf16>, vector<128x128xbf16>, vector<16x128xf32> -> vector<16x128xf32>
    %40 = arith.addf %38, %39 : vector<16x128xf32>
    %41 = math.tanh %40 : vector<16x128xf32>
    %42 = arith.truncf %41 : vector<16x128xf32> to vector<16x128xbf16>
    %c3 = arith.constant 3 : index
    %c0_22 = arith.constant 0 : index
    %c0_23 = arith.constant 0 : index
    %43 = vector.load %arg12[%c3, %c0_22, %c0_23] : memref<8x16x128xbf16, #tpu.memory_space<vmem>>, vector<1x16x128xbf16>
    %44 = vector.shape_cast %43 : vector<1x16x128xbf16> to vector<16x128xbf16>
    %45 = vector.shape_cast %42 : vector<16x128xbf16> to vector<1x16x128xbf16>
    tpu.vector_store %arg12[%c3, %c0_22, %c0_23], %45 {strides = array<i32>} : memref<8x16x128xbf16, #tpu.memory_space<vmem>>, vector<1x16x128xbf16>,
    %46 = vector.extract_strided_slice %6 {offsets = [4, 0, 0], sizes = [1, 16, 128], strides = [1, 1, 1]} : vector<8x16x128xf32> to vector<1x16x128xf32>
    %47 = vector.shape_cast %46 : vector<1x16x128xf32> to vector<16x128xf32>
    %cst_24 = arith.constant dense<0.000000e+00> : vector<16x128xf32>
    %48 = tpu.matmul %42, %5, %cst_24 {dimension_numbers = #tpu.dot_dimension_numbers<[1], [0], [0], [1], [0, 0, 1, 1], [], []>} : vector<16x128xbf16>, vector<128x128xbf16>, vector<16x128xf32> -> vector<16x128xf32>
    %49 = arith.addf %47, %48 : vector<16x128xf32>
    %50 = math.tanh %49 : vector<16x128xf32>
    %51 = arith.truncf %50 : vector<16x128xf32> to vector<16x128xbf16>
    %c4 = arith.constant 4 : index
    %c0_25 = arith.constant 0 : index
    %c0_26 = arith.constant 0 : index
    %52 = vector.load %arg12[%c4, %c0_25, %c0_26] : memref<8x16x128xbf16, #tpu.memory_space<vmem>>, vector<1x16x128xbf16>
    %53 = vector.shape_cast %52 : vector<1x16x128xbf16> to vector<16x128xbf16>
    %54 = vector.shape_cast %51 : vector<16x128xbf16> to vector<1x16x128xbf16>
    tpu.vector_store %arg12[%c4, %c0_25, %c0_26], %54 {strides = array<i32>} : memref<8x16x128xbf16, #tpu.memory_space<vmem>>, vector<1x16x128xbf16>,
    %55 = vector.extract_strided_slice %6 {offsets = [5, 0, 0], sizes = [1, 16, 128], strides = [1, 1, 1]} : vector<8x16x128xf32> to vector<1x16x128xf32>
    %56 = vector.shape_cast %55 : vector<1x16x128xf32> to vector<16x128xf32>
    %cst_27 = arith.constant dense<0.000000e+00> : vector<16x128xf32>
    %57 = tpu.matmul %51, %5, %cst_27 {dimension_numbers = #tpu.dot_dimension_numbers<[1], [0], [0], [1], [0, 0, 1, 1], [], []>} : vector<16x128xbf16>, vector<128x128xbf16>, vector<16x128xf32> -> vector<16x128xf32>
    %58 = arith.addf %56, %57 : vector<16x128xf32>
    %59 = math.tanh %58 : vector<16x128xf32>
    %60 = arith.truncf %59 : vector<16x128xf32> to vector<16x128xbf16>
    %c5 = arith.constant 5 : index
    %c0_28 = arith.constant 0 : index
    %c0_29 = arith.constant 0 : index
    %61 = vector.load %arg12[%c5, %c0_28, %c0_29] : memref<8x16x128xbf16, #tpu.memory_space<vmem>>, vector<1x16x128xbf16>
    %62 = vector.shape_cast %61 : vector<1x16x128xbf16> to vector<16x128xbf16>
    %63 = vector.shape_cast %60 : vector<16x128xbf16> to vector<1x16x128xbf16>
    tpu.vector_store %arg12[%c5, %c0_28, %c0_29], %63 {strides = array<i32>} : memref<8x16x128xbf16, #tpu.memory_space<vmem>>, vector<1x16x128xbf16>,
    %64 = vector.extract_strided_slice %6 {offsets = [6, 0, 0], sizes = [1, 16, 128], strides = [1, 1, 1]} : vector<8x16x128xf32> to vector<1x16x128xf32>
    %65 = vector.shape_cast %64 : vector<1x16x128xf32> to vector<16x128xf32>
    %cst_30 = arith.constant dense<0.000000e+00> : vector<16x128xf32>
    %66 = tpu.matmul %60, %5, %cst_30 {dimension_numbers = #tpu.dot_dimension_numbers<[1], [0], [0], [1], [0, 0, 1, 1], [], []>} : vector<16x128xbf16>, vector<128x128xbf16>, vector<16x128xf32> -> vector<16x128xf32>
    %67 = arith.addf %65, %66 : vector<16x128xf32>
    %68 = math.tanh %67 : vector<16x128xf32>
    %69 = arith.truncf %68 : vector<16x128xf32> to vector<16x128xbf16>
    %c6 = arith.constant 6 : index
    %c0_31 = arith.constant 0 : index
    %c0_32 = arith.constant 0 : index
    %70 = vector.load %arg12[%c6, %c0_31, %c0_32] : memref<8x16x128xbf16, #tpu.memory_space<vmem>>, vector<1x16x128xbf16>
    %71 = vector.shape_cast %70 : vector<1x16x128xbf16> to vector<16x128xbf16>
    %72 = vector.shape_cast %69 : vector<16x128xbf16> to vector<1x16x128xbf16>
    tpu.vector_store %arg12[%c6, %c0_31, %c0_32], %72 {strides = array<i32>} : memref<8x16x128xbf16, #tpu.memory_space<vmem>>, vector<1x16x128xbf16>,
    %73 = vector.extract_strided_slice %6 {offsets = [7, 0, 0], sizes = [1, 16, 128], strides = [1, 1, 1]} : vector<8x16x128xf32> to vector<1x16x128xf32>
    %74 = vector.shape_cast %73 : vector<1x16x128xf32> to vector<16x128xf32>
    %cst_33 = arith.constant dense<0.000000e+00> : vector<16x128xf32>
    %75 = tpu.matmul %69, %5, %cst_33 {dimension_numbers = #tpu.dot_dimension_numbers<[1], [0], [0], [1], [0, 0, 1, 1], [], []>} : vector<16x128xbf16>, vector<128x128xbf16>, vector<16x128xf32> -> vector<16x128xf32>
    %76 = arith.addf %74, %75 : vector<16x128xf32>
    %77 = math.tanh %76 : vector<16x128xf32>
    %78 = arith.truncf %77 : vector<16x128xf32> to vector<16x128xbf16>
    %c7 = arith.constant 7 : index
    %c0_34 = arith.constant 0 : index
    %c0_35 = arith.constant 0 : index
    %79 = vector.load %arg12[%c7, %c0_34, %c0_35] : memref<8x16x128xbf16, #tpu.memory_space<vmem>>, vector<1x16x128xbf16>
    %80 = vector.shape_cast %79 : vector<1x16x128xbf16> to vector<16x128xbf16>
    %81 = vector.shape_cast %78 : vector<16x128xbf16> to vector<1x16x128xbf16>
    tpu.vector_store %arg12[%c7, %c0_34, %c0_35], %81 {strides = array<i32>} : memref<8x16x128xbf16, #tpu.memory_space<vmem>>, vector<1x16x128xbf16>,
    %c0_36 = arith.constant 0 : index
    %c0_37 = arith.constant 0 : index
    %c0_38 = arith.constant 0 : index
    %82 = vector.load %arg11[%c0_36, %c0_37, %c0_38] : memref<2x16x128xf32, #tpu.memory_space<vmem>>, vector<1x16x128xf32>
    %83 = vector.shape_cast %82 : vector<1x16x128xf32> to vector<16x128xf32>
    %84 = vector.shape_cast %77 : vector<16x128xf32> to vector<1x16x128xf32>
    tpu.vector_store %arg11[%c0_36, %c0_37, %c0_38], %84 {strides = array<i32>} : memref<2x16x128xf32, #tpu.memory_space<vmem>>, vector<1x16x128xf32>,
    %c0_39 = arith.constant 0 : index
    %c0_40 = arith.constant 0 : index
    %85 = vector.load %arg5[%c0_39, %c0_40] : memref<128x128xbf16, #tpu.memory_space<vmem>>, vector<128x128xbf16>
    %c0_41 = arith.constant 0 : index
    %c0_42 = arith.constant 0 : index
    %c0_43 = arith.constant 0 : index
    %86 = vector.load %arg12[%c0_41, %c0_42, %c0_43] : memref<8x16x128xbf16, #tpu.memory_space<vmem>>, vector<8x16x128xbf16>
    %87 = vector.shape_cast %86 : vector<8x16x128xbf16> to vector<128x128xbf16>
    %c0_44 = arith.constant 0 : index
    %c0_45 = arith.constant 0 : index
    %88 = vector.load %arg4[%c0_44, %c0_45] : memref<128x128xbf16, #tpu.memory_space<vmem>>, vector<128x128xbf16>
    %cst_46 = arith.constant dense<0.000000e+00> : vector<128x128xf32>
    %89 = tpu.matmul %87, %88, %cst_46 {dimension_numbers = #tpu.dot_dimension_numbers<[1], [0], [0], [1], [0, 0, 1, 1], [], []>} : vector<128x128xbf16>, vector<128x128xbf16>, vector<128x128xf32> -> vector<128x128xf32>
    %90 = vector.shape_cast %89 : vector<128x128xf32> to vector<8x16x128xf32>
    %c0_47 = arith.constant 0 : index
    %c0_48 = arith.constant 0 : index
    %91 = vector.load %arg6[%c0_47, %c0_48] : memref<1x128xf32, #tpu.memory_space<vmem>>, vector<1x128xf32>
    %92 = vector.shape_cast %91 : vector<1x128xf32> to vector<1x1x128xf32>
    %93 = vector.broadcast %92 : vector<1x1x128xf32> to vector<8x16x128xf32>
    %94 = arith.addf %90, %93 : vector<8x16x128xf32>
    %c1_49 = arith.constant 1 : index
    %c0_50 = arith.constant 0 : index
    %c0_51 = arith.constant 0 : index
    %95 = vector.load %arg11[%c1_49, %c0_50, %c0_51] : memref<2x16x128xf32, #tpu.memory_space<vmem>>, vector<1x16x128xf32>
    %96 = vector.shape_cast %95 : vector<1x16x128xf32> to vector<16x128xf32>
    %97 = arith.truncf %96 : vector<16x128xf32> to vector<16x128xbf16>
    %98 = vector.extract_strided_slice %94 {offsets = [0, 0, 0], sizes = [1, 16, 128], strides = [1, 1, 1]} : vector<8x16x128xf32> to vector<1x16x128xf32>
    %99 = vector.shape_cast %98 : vector<1x16x128xf32> to vector<16x128xf32>
    %cst_52 = arith.constant dense<0.000000e+00> : vector<16x128xf32>
    %100 = tpu.matmul %97, %85, %cst_52 {dimension_numbers = #tpu.dot_dimension_numbers<[1], [0], [0], [1], [0, 0, 1, 1], [], []>} : vector<16x128xbf16>, vector<128x128xbf16>, vector<16x128xf32> -> vector<16x128xf32>
    %101 = arith.addf %99, %100 : vector<16x128xf32>
    %102 = math.tanh %101 : vector<16x128xf32>
    %103 = arith.truncf %102 : vector<16x128xf32> to vector<16x128xbf16>
    %cst_53 = arith.constant dense<0.000000e+00> : vector<16x128xf32>
    %104 = tpu.matmul %103, %3, %cst_53 {dimension_numbers = #tpu.dot_dimension_numbers<[1], [0], [0], [1], [0, 0, 1, 1], [], []>} : vector<16x128xbf16>, vector<128x128xbf16>, vector<16x128xf32> -> vector<16x128xf32>
    %105 = vector.broadcast %4 : vector<1x128xf32> to vector<16x128xf32>
    %106 = arith.addf %104, %105 : vector<16x128xf32>
    %c0_54 = arith.constant 0 : index
    %c0_55 = arith.constant 0 : index
    %c0_56 = arith.constant 0 : index
    %107 = vector.load %arg9[%c0_54, %c0_55, %c0_56] : memref<8x16x128xf32, #tpu.memory_space<vmem>>, vector<1x16x128xf32>
    %108 = vector.shape_cast %107 : vector<1x16x128xf32> to vector<16x128xf32>
    %109 = vector.shape_cast %106 : vector<16x128xf32> to vector<1x16x128xf32>
    tpu.vector_store %arg9[%c0_54, %c0_55, %c0_56], %109 {strides = array<i32>} : memref<8x16x128xf32, #tpu.memory_space<vmem>>, vector<1x16x128xf32>,
    %110 = vector.extract_strided_slice %94 {offsets = [1, 0, 0], sizes = [1, 16, 128], strides = [1, 1, 1]} : vector<8x16x128xf32> to vector<1x16x128xf32>
    %111 = vector.shape_cast %110 : vector<1x16x128xf32> to vector<16x128xf32>
    %cst_57 = arith.constant dense<0.000000e+00> : vector<16x128xf32>
    %112 = tpu.matmul %103, %85, %cst_57 {dimension_numbers = #tpu.dot_dimension_numbers<[1], [0], [0], [1], [0, 0, 1, 1], [], []>} : vector<16x128xbf16>, vector<128x128xbf16>, vector<16x128xf32> -> vector<16x128xf32>
    %113 = arith.addf %111, %112 : vector<16x128xf32>
    %114 = math.tanh %113 : vector<16x128xf32>
    %115 = arith.truncf %114 : vector<16x128xf32> to vector<16x128xbf16>
    %cst_58 = arith.constant dense<0.000000e+00> : vector<16x128xf32>
    %116 = tpu.matmul %115, %3, %cst_58 {dimension_numbers = #tpu.dot_dimension_numbers<[1], [0], [0], [1], [0, 0, 1, 1], [], []>} : vector<16x128xbf16>, vector<128x128xbf16>, vector<16x128xf32> -> vector<16x128xf32>
    %117 = vector.broadcast %4 : vector<1x128xf32> to vector<16x128xf32>
    %118 = arith.addf %116, %117 : vector<16x128xf32>
    %c1_59 = arith.constant 1 : index
    %c0_60 = arith.constant 0 : index
    %c0_61 = arith.constant 0 : index
    %119 = vector.load %arg9[%c1_59, %c0_60, %c0_61] : memref<8x16x128xf32, #tpu.memory_space<vmem>>, vector<1x16x128xf32>
    %120 = vector.shape_cast %119 : vector<1x16x128xf32> to vector<16x128xf32>
    %121 = vector.shape_cast %118 : vector<16x128xf32> to vector<1x16x128xf32>
    tpu.vector_store %arg9[%c1_59, %c0_60, %c0_61], %121 {strides = array<i32>} : memref<8x16x128xf32, #tpu.memory_space<vmem>>, vector<1x16x128xf32>,
    %122 = vector.extract_strided_slice %94 {offsets = [2, 0, 0], sizes = [1, 16, 128], strides = [1, 1, 1]} : vector<8x16x128xf32> to vector<1x16x128xf32>
    %123 = vector.shape_cast %122 : vector<1x16x128xf32> to vector<16x128xf32>
    %cst_62 = arith.constant dense<0.000000e+00> : vector<16x128xf32>
    %124 = tpu.matmul %115, %85, %cst_62 {dimension_numbers = #tpu.dot_dimension_numbers<[1], [0], [0], [1], [0, 0, 1, 1], [], []>} : vector<16x128xbf16>, vector<128x128xbf16>, vector<16x128xf32> -> vector<16x128xf32>
    %125 = arith.addf %123, %124 : vector<16x128xf32>
    %126 = math.tanh %125 : vector<16x128xf32>
    %127 = arith.truncf %126 : vector<16x128xf32> to vector<16x128xbf16>
    %cst_63 = arith.constant dense<0.000000e+00> : vector<16x128xf32>
    %128 = tpu.matmul %127, %3, %cst_63 {dimension_numbers = #tpu.dot_dimension_numbers<[1], [0], [0], [1], [0, 0, 1, 1], [], []>} : vector<16x128xbf16>, vector<128x128xbf16>, vector<16x128xf32> -> vector<16x128xf32>
    %129 = vector.broadcast %4 : vector<1x128xf32> to vector<16x128xf32>
    %130 = arith.addf %128, %129 : vector<16x128xf32>
    %c2_64 = arith.constant 2 : index
    %c0_65 = arith.constant 0 : index
    %c0_66 = arith.constant 0 : index
    %131 = vector.load %arg9[%c2_64, %c0_65, %c0_66] : memref<8x16x128xf32, #tpu.memory_space<vmem>>, vector<1x16x128xf32>
    %132 = vector.shape_cast %131 : vector<1x16x128xf32> to vector<16x128xf32>
    %133 = vector.shape_cast %130 : vector<16x128xf32> to vector<1x16x128xf32>
    tpu.vector_store %arg9[%c2_64, %c0_65, %c0_66], %133 {strides = array<i32>} : memref<8x16x128xf32, #tpu.memory_space<vmem>>, vector<1x16x128xf32>,
    %134 = vector.extract_strided_slice %94 {offsets = [3, 0, 0], sizes = [1, 16, 128], strides = [1, 1, 1]} : vector<8x16x128xf32> to vector<1x16x128xf32>
    %135 = vector.shape_cast %134 : vector<1x16x128xf32> to vector<16x128xf32>
    %cst_67 = arith.constant dense<0.000000e+00> : vector<16x128xf32>
    %136 = tpu.matmul %127, %85, %cst_67 {dimension_numbers = #tpu.dot_dimension_numbers<[1], [0], [0], [1], [0, 0, 1, 1], [], []>} : vector<16x128xbf16>, vector<128x128xbf16>, vector<16x128xf32> -> vector<16x128xf32>
    %137 = arith.addf %135, %136 : vector<16x128xf32>
    %138 = math.tanh %137 : vector<16x128xf32>
    %139 = arith.truncf %138 : vector<16x128xf32> to vector<16x128xbf16>
    %cst_68 = arith.constant dense<0.000000e+00> : vector<16x128xf32>
    %140 = tpu.matmul %139, %3, %cst_68 {dimension_numbers = #tpu.dot_dimension_numbers<[1], [0], [0], [1], [0, 0, 1, 1], [], []>} : vector<16x128xbf16>, vector<128x128xbf16>, vector<16x128xf32> -> vector<16x128xf32>
    %141 = vector.broadcast %4 : vector<1x128xf32> to vector<16x128xf32>
    %142 = arith.addf %140, %141 : vector<16x128xf32>
    %c3_69 = arith.constant 3 : index
    %c0_70 = arith.constant 0 : index
    %c0_71 = arith.constant 0 : index
    %143 = vector.load %arg9[%c3_69, %c0_70, %c0_71] : memref<8x16x128xf32, #tpu.memory_space<vmem>>, vector<1x16x128xf32>
    %144 = vector.shape_cast %143 : vector<1x16x128xf32> to vector<16x128xf32>
    %145 = vector.shape_cast %142 : vector<16x128xf32> to vector<1x16x128xf32>
    tpu.vector_store %arg9[%c3_69, %c0_70, %c0_71], %145 {strides = array<i32>} : memref<8x16x128xf32, #tpu.memory_space<vmem>>, vector<1x16x128xf32>,
    %146 = vector.extract_strided_slice %94 {offsets = [4, 0, 0], sizes = [1, 16, 128], strides = [1, 1, 1]} : vector<8x16x128xf32> to vector<1x16x128xf32>
    %147 = vector.shape_cast %146 : vector<1x16x128xf32> to vector<16x128xf32>
    %cst_72 = arith.constant dense<0.000000e+00> : vector<16x128xf32>
    %148 = tpu.matmul %139, %85, %cst_72 {dimension_numbers = #tpu.dot_dimension_numbers<[1], [0], [0], [1], [0, 0, 1, 1], [], []>} : vector<16x128xbf16>, vector<128x128xbf16>, vector<16x128xf32> -> vector<16x128xf32>
    %149 = arith.addf %147, %148 : vector<16x128xf32>
    %150 = math.tanh %149 : vector<16x128xf32>
    %151 = arith.truncf %150 : vector<16x128xf32> to vector<16x128xbf16>
    %cst_73 = arith.constant dense<0.000000e+00> : vector<16x128xf32>
    %152 = tpu.matmul %151, %3, %cst_73 {dimension_numbers = #tpu.dot_dimension_numbers<[1], [0], [0], [1], [0, 0, 1, 1], [], []>} : vector<16x128xbf16>, vector<128x128xbf16>, vector<16x128xf32> -> vector<16x128xf32>
    %153 = vector.broadcast %4 : vector<1x128xf32> to vector<16x128xf32>
    %154 = arith.addf %152, %153 : vector<16x128xf32>
    %c4_74 = arith.constant 4 : index
    %c0_75 = arith.constant 0 : index
    %c0_76 = arith.constant 0 : index
    %155 = vector.load %arg9[%c4_74, %c0_75, %c0_76] : memref<8x16x128xf32, #tpu.memory_space<vmem>>, vector<1x16x128xf32>
    %156 = vector.shape_cast %155 : vector<1x16x128xf32> to vector<16x128xf32>
    %157 = vector.shape_cast %154 : vector<16x128xf32> to vector<1x16x128xf32>
    tpu.vector_store %arg9[%c4_74, %c0_75, %c0_76], %157 {strides = array<i32>} : memref<8x16x128xf32, #tpu.memory_space<vmem>>, vector<1x16x128xf32>,
    %158 = vector.extract_strided_slice %94 {offsets = [5, 0, 0], sizes = [1, 16, 128], strides = [1, 1, 1]} : vector<8x16x128xf32> to vector<1x16x128xf32>
    %159 = vector.shape_cast %158 : vector<1x16x128xf32> to vector<16x128xf32>
    %cst_77 = arith.constant dense<0.000000e+00> : vector<16x128xf32>
    %160 = tpu.matmul %151, %85, %cst_77 {dimension_numbers = #tpu.dot_dimension_numbers<[1], [0], [0], [1], [0, 0, 1, 1], [], []>} : vector<16x128xbf16>, vector<128x128xbf16>, vector<16x128xf32> -> vector<16x128xf32>
    %161 = arith.addf %159, %160 : vector<16x128xf32>
    %162 = math.tanh %161 : vector<16x128xf32>
    %163 = arith.truncf %162 : vector<16x128xf32> to vector<16x128xbf16>
    %cst_78 = arith.constant dense<0.000000e+00> : vector<16x128xf32>
    %164 = tpu.matmul %163, %3, %cst_78 {dimension_numbers = #tpu.dot_dimension_numbers<[1], [0], [0], [1], [0, 0, 1, 1], [], []>} : vector<16x128xbf16>, vector<128x128xbf16>, vector<16x128xf32> -> vector<16x128xf32>
    %165 = vector.broadcast %4 : vector<1x128xf32> to vector<16x128xf32>
    %166 = arith.addf %164, %165 : vector<16x128xf32>
    %c5_79 = arith.constant 5 : index
    %c0_80 = arith.constant 0 : index
    %c0_81 = arith.constant 0 : index
    %167 = vector.load %arg9[%c5_79, %c0_80, %c0_81] : memref<8x16x128xf32, #tpu.memory_space<vmem>>, vector<1x16x128xf32>
    %168 = vector.shape_cast %167 : vector<1x16x128xf32> to vector<16x128xf32>
    %169 = vector.shape_cast %166 : vector<16x128xf32> to vector<1x16x128xf32>
    tpu.vector_store %arg9[%c5_79, %c0_80, %c0_81], %169 {strides = array<i32>} : memref<8x16x128xf32, #tpu.memory_space<vmem>>, vector<1x16x128xf32>,
    %170 = vector.extract_strided_slice %94 {offsets = [6, 0, 0], sizes = [1, 16, 128], strides = [1, 1, 1]} : vector<8x16x128xf32> to vector<1x16x128xf32>
    %171 = vector.shape_cast %170 : vector<1x16x128xf32> to vector<16x128xf32>
    %cst_82 = arith.constant dense<0.000000e+00> : vector<16x128xf32>
    %172 = tpu.matmul %163, %85, %cst_82 {dimension_numbers = #tpu.dot_dimension_numbers<[1], [0], [0], [1], [0, 0, 1, 1], [], []>} : vector<16x128xbf16>, vector<128x128xbf16>, vector<16x128xf32> -> vector<16x128xf32>
    %173 = arith.addf %171, %172 : vector<16x128xf32>
    %174 = math.tanh %173 : vector<16x128xf32>
    %175 = arith.truncf %174 : vector<16x128xf32> to vector<16x128xbf16>
    %cst_83 = arith.constant dense<0.000000e+00> : vector<16x128xf32>
    %176 = tpu.matmul %175, %3, %cst_83 {dimension_numbers = #tpu.dot_dimension_numbers<[1], [0], [0], [1], [0, 0, 1, 1], [], []>} : vector<16x128xbf16>, vector<128x128xbf16>, vector<16x128xf32> -> vector<16x128xf32>
    %177 = vector.broadcast %4 : vector<1x128xf32> to vector<16x128xf32>
    %178 = arith.addf %176, %177 : vector<16x128xf32>
    %c6_84 = arith.constant 6 : index
    %c0_85 = arith.constant 0 : index
    %c0_86 = arith.constant 0 : index
    %179 = vector.load %arg9[%c6_84, %c0_85, %c0_86] : memref<8x16x128xf32, #tpu.memory_space<vmem>>, vector<1x16x128xf32>
    %180 = vector.shape_cast %179 : vector<1x16x128xf32> to vector<16x128xf32>
    %181 = vector.shape_cast %178 : vector<16x128xf32> to vector<1x16x128xf32>
    tpu.vector_store %arg9[%c6_84, %c0_85, %c0_86], %181 {strides = array<i32>} : memref<8x16x128xf32, #tpu.memory_space<vmem>>, vector<1x16x128xf32>,
    %182 = vector.extract_strided_slice %94 {offsets = [7, 0, 0], sizes = [1, 16, 128], strides = [1, 1, 1]} : vector<8x16x128xf32> to vector<1x16x128xf32>
    %183 = vector.shape_cast %182 : vector<1x16x128xf32> to vector<16x128xf32>
    %cst_87 = arith.constant dense<0.000000e+00> : vector<16x128xf32>
    %184 = tpu.matmul %175, %85, %cst_87 {dimension_numbers = #tpu.dot_dimension_numbers<[1], [0], [0], [1], [0, 0, 1, 1], [], []>} : vector<16x128xbf16>, vector<128x128xbf16>, vector<16x128xf32> -> vector<16x128xf32>
    %185 = arith.addf %183, %184 : vector<16x128xf32>
    %186 = math.tanh %185 : vector<16x128xf32>
    %187 = arith.truncf %186 : vector<16x128xf32> to vector<16x128xbf16>
    %cst_88 = arith.constant dense<0.000000e+00> : vector<16x128xf32>
    %188 = tpu.matmul %187, %3, %cst_88 {dimension_numbers = #tpu.dot_dimension_numbers<[1], [0], [0], [1], [0, 0, 1, 1], [], []>} : vector<16x128xbf16>, vector<128x128xbf16>, vector<16x128xf32> -> vector<16x128xf32>
    %189 = vector.broadcast %4 : vector<1x128xf32> to vector<16x128xf32>
    %190 = arith.addf %188, %189 : vector<16x128xf32>
    %c7_89 = arith.constant 7 : index
    %c0_90 = arith.constant 0 : index
    %c0_91 = arith.constant 0 : index
    %191 = vector.load %arg9[%c7_89, %c0_90, %c0_91] : memref<8x16x128xf32, #tpu.memory_space<vmem>>, vector<1x16x128xf32>
    %192 = vector.shape_cast %191 : vector<1x16x128xf32> to vector<16x128xf32>
    %193 = vector.shape_cast %190 : vector<16x128xf32> to vector<1x16x128xf32>
    tpu.vector_store %arg9[%c7_89, %c0_90, %c0_91], %193 {strides = array<i32>} : memref<8x16x128xf32, #tpu.memory_space<vmem>>, vector<1x16x128xf32>,
    %c1_92 = arith.constant 1 : index
    %c0_93 = arith.constant 0 : index
    %c0_94 = arith.constant 0 : index
    %194 = vector.load %arg11[%c1_92, %c0_93, %c0_94] : memref<2x16x128xf32, #tpu.memory_space<vmem>>, vector<1x16x128xf32>
    %195 = vector.shape_cast %194 : vector<1x16x128xf32> to vector<16x128xf32>
    %196 = vector.shape_cast %186 : vector<16x128xf32> to vector<1x16x128xf32>
    tpu.vector_store %arg11[%c1_92, %c0_93, %c0_94], %196 {strides = array<i32>} : memref<2x16x128xf32, #tpu.memory_space<vmem>>, vector<1x16x128xf32>,
    %c0_i32_95 = arith.constant 0 : i32
    %197 = arith.cmpi eq, %arg1, %c0_i32_95 : i32
    %198 = arith.extui %197 : i1 to i32
    %c0_i32_96 = arith.constant 0 : i32
    %199 = arith.cmpi ne, %198, %c0_i32_96 : i32
    scf.if %199 {
      %c0_97 = arith.constant 0 : index
      %c0_98 = arith.constant 0 : index
      %c0_99 = arith.constant 0 : index
      %200 = vector.load %arg11[%c0_97, %c0_98, %c0_99] : memref<2x16x128xf32, #tpu.memory_space<vmem>>, vector<2x16x128xf32>
      %c0_100 = arith.constant 0 : index
      %c0_101 = arith.constant 0 : index
      %c0_102 = arith.constant 0 : index
      %201 = vector.load %arg10[%c0_100, %c0_101, %c0_102] : memref<2x16x128xf32, #tpu.memory_space<vmem>>, vector<2x16x128xf32>
      tpu.vector_store %arg10[%c0_100, %c0_101, %c0_102], %200 {strides = array<i32>} : memref<2x16x128xf32, #tpu.memory_space<vmem>>, vector<2x16x128xf32>,
    } else {
    }
    return
  }
  func.func @transform_0(%arg0: i32, %arg1: i32) -> (i32, i32, i32) {
    %c0_i32 = arith.constant 0 : i32
    %c0_i32_0 = arith.constant 0 : i32
    return %arg1, %arg0, %c0_i32 : i32, i32, i32
  }
  func.func @transform_1(%arg0: i32, %arg1: i32) -> (i32, i32) {
    %c0_i32 = arith.constant 0 : i32
    %c0_i32_0 = arith.constant 0 : i32
    %c0_i32_1 = arith.constant 0 : i32
    return %c0_i32, %c0_i32_0 : i32, i32
  }
  func.func @transform_2(%arg0: i32, %arg1: i32) -> (i32, i32) {
    %c0_i32 = arith.constant 0 : i32
    %c0_i32_0 = arith.constant 0 : i32
    %c0_i32_1 = arith.constant 0 : i32
    return %c0_i32, %c0_i32_0 : i32, i32
  }
  func.func @transform_3(%arg0: i32, %arg1: i32) -> (i32, i32) {
    %c0_i32 = arith.constant 0 : i32
    %c0_i32_0 = arith.constant 0 : i32
    %c0_i32_1 = arith.constant 0 : i32
    return %c0_i32, %c0_i32_0 : i32, i32
  }
  func.func @transform_4(%arg0: i32, %arg1: i32) -> (i32, i32) {
    %c0_i32 = arith.constant 0 : i32
    %c0_i32_0 = arith.constant 0 : i32
    %c0_i32_1 = arith.constant 0 : i32
    return %c0_i32, %c0_i32_0 : i32, i32
  }
  func.func @transform_5(%arg0: i32, %arg1: i32) -> (i32, i32) {
    %c0_i32 = arith.constant 0 : i32
    %c0_i32_0 = arith.constant 0 : i32
    %c0_i32_1 = arith.constant 0 : i32
    return %c0_i32, %c0_i32_0 : i32, i32
  }
  func.func @transform_6(%arg0: i32, %arg1: i32) -> (i32, i32) {
    %c0_i32 = arith.constant 0 : i32
    %c0_i32_0 = arith.constant 0 : i32
    %c0_i32_1 = arith.constant 0 : i32
    return %c0_i32, %c0_i32_0 : i32, i32
  }
  func.func @transform_7(%arg0: i32, %arg1: i32) -> (i32, i32, i32) {
    %c0_i32 = arith.constant 0 : i32
    %c0_i32_0 = arith.constant 0 : i32
    return %arg1, %arg0, %c0_i32 : i32, i32, i32
  }
  func.func @transform_8(%arg0: i32, %arg1: i32) -> (i32, i32, i32) {
    %c0_i32 = arith.constant 0 : i32
    %c0_i32_0 = arith.constant 0 : i32
    %c0_i32_1 = arith.constant 0 : i32
    return %c0_i32, %arg0, %c0_i32_0 : i32, i32, i32
  }
}

</mosaic_0001>

<llo_original>
// kernel: forward.1
$region0: #{forward.1}
  #allocation0 [shape = 'u32[]', space=smem, size = 0x4, offset = 0x4, fixed_abs, tag = 'smem constant byte address 0x4 - core index']
  #allocation1 [shape = 'u32[144,128]{1,0:T(1,128)}', space=vmem, size = 0x12000, scoped, tag = 'internal scratch']
  #allocation2 [shape = 'f32[2,16,128]{2,1,0:T(8,128)}', space=vmem, size = 0x4000, scoped, tag = 'scratch operand']
  #allocation3 [shape = 'bf16[8,16,128]{2,1,0:T(8,128)(2,1)}', space=vmem, size = 0x8000, scoped, tag = 'scratch operand']
  %s0 = inlined_call_operand.vmem [shape: f32[8,16,128], index: 0, kind: input, shape index: {}]
  %s1 = inlined_call_operand.vmem [shape: bf16[128,128], index: 1, kind: input, shape index: {}]
  %s2 = inlined_call_operand.vmem [shape: bf16[128,128], index: 2, kind: input, shape index: {}]
  %s3 = inlined_call_operand.vmem [shape: bf16[128,128], index: 3, kind: input, shape index: {}]
  %s4 = inlined_call_operand.vmem [shape: f32[1,128], index: 4, kind: input, shape index: {}]
  %s5 = inlined_call_operand.vmem [shape: bf16[128,128], index: 5, kind: input, shape index: {}]
  %s6 = inlined_call_operand.vmem [shape: f32[1,128], index: 6, kind: input, shape index: {}]
  %s7 = inlined_call_operand.vmem [shape: f32[8,16,128], index: 7, kind: output, shape index: {0}]
  %s8 = inlined_call_operand.vmem [shape: f32[2,16,128], index: 8, kind: output, shape index: {1}]
  %9 = xla_tuple %s7, %s8
  %s10 = sld [smem:[#allocation0]]
  $region54: #{forward.1} parent=0
    _
  %s12 = ssub.s32 1, %s10
  %s13 = scalar_select 0, %s12, %s10
  // Predicated region
  $region2: #{forward.1} parent=0 // pred_check
    _
  $region3: #{forward.1} parent=0 // pred_check_branch
    %15 = sbr.rel (0) target = $region5
  $region4: #{forward.1} parent=0 // pred_region
    _
  $region5: #{forward.1} parent=0 // pred_fallthru
    _
  // Predicated region
  $region6: #{forward.1} parent=0 // pred_check
    _
  $region7: #{forward.1} parent=0 // pred_check_branch
    %17 = sbr.rel (0) target = $region9
  $region8: #{forward.1} parent=0 // pred_region
    _
  $region9: #{forward.1} parent=0 // pred_fallthru
    _
  // Predicated region
  $region10: #{forward.1} parent=0 // pred_check
    _
  $region11: #{forward.1} parent=0 // pred_check_branch
    %19 = sbr.rel (0) target = $region13
  $region12: #{forward.1} parent=0 // pred_region
    _
  $region13: #{forward.1} parent=0 // pred_fallthru
    _
  // Predicated region
  $region14: #{forward.1} parent=0 // pred_check
    _
  $region15: #{forward.1} parent=0 // pred_check_branch
    %21 = sbr.rel (0) target = $region17
  $region16: #{forward.1} parent=0 // pred_region
    _
  $region17: #{forward.1} parent=0 // pred_fallthru
    _
  // Predicated region
  $region18: #{forward.1} parent=0 // pred_check
    _
  $region19: #{forward.1} parent=0 // pred_check_branch
    %23 = sbr.rel (0) target = $region21
  $region20: #{forward.1} parent=0 // pred_region
    _
  $region21: #{forward.1} parent=0 // pred_fallthru
    _
  // Predicated region
  $region22: #{forward.1} parent=0 // pred_check
    _
  $region23: #{forward.1} parent=0 // pred_check_branch
    %25 = sbr.rel (0) target = $region25
  $region24: #{forward.1} parent=0 // pred_region
    _
  $region25: #{forward.1} parent=0 // pred_fallthru
    _
  // Predicated region
  $region26: #{forward.1} parent=0 // pred_check
    _
  $region27: #{forward.1} parent=0 // pred_check_branch
    %27 = sbr.rel (0) target = $region29
  $region28: #{forward.1} parent=0 // pred_region
    _
  $region29: #{forward.1} parent=0 // pred_fallthru
    _
  %p29 = scmp.eq.s32.totalorder 0, 0
  // Predicated region
  $region30: #{forward.1} parent=0 // pred_check
    %p30 = pneg %p29
  $region31: #{forward.1} parent=0 // pred_check_branch
    %32 = sbr.rel (%p30) target = $region33
  $region32: #{forward.1} parent=0 // pred_region
    %33 = vst [vmem:[#allocation2] sm:$0xff] 0.0
    %34 = vst [vmem:[#allocation2 + $0x8] sm:$0xff] 0.0
    %35 = vst [vmem:[#allocation2 + $0x10] sm:$0xff] 0.0
    %36 = vst [vmem:[#allocation2 + $0x18] sm:$0xff] 0.0
  $region33: #{forward.1} parent=0 // pred_fallthru
    _
  %v37 = vld [vmem:[%s5] sm:$0xf]
  %v38 = vld [vmem:[%s5 + $0x4] sm:$0xf]
  %v39 = vld [vmem:[%s5 + $0x8] sm:$0xf]
  %v40 = vld [vmem:[%s5 + $0xc] sm:$0xf]
  %v41 = vld [vmem:[%s5 + $0x10] sm:$0xf]
  %v42 = vld [vmem:[%s5 + $0x14] sm:$0xf]
  %v43 = vld [vmem:[%s5 + $0x18] sm:$0xf]
  %v44 = vld [vmem:[%s5 + $0x1c] sm:$0xf]
  %v45 = vld [vmem:[%s5 + $0x20] sm:$0xf]
  %v46 = vld [vmem:[%s5 + $0x24] sm:$0xf]
  %v47 = vld [vmem:[%s5 + $0x28] sm:$0xf]
  %v48 = vld [vmem:[%s5 + $0x2c] sm:$0xf]
  %v49 = vld [vmem:[%s5 + $0x30] sm:$0xf]
  %v50 = vld [vmem:[%s5 + $0x34] sm:$0xf]
  %v51 = vld [vmem:[%s5 + $0x38] sm:$0xf]
  %v52 = vld [vmem:[%s5 + $0x3c] sm:$0xf]
  %v53 = vld [vmem:[%s6] sm:$0x1]
  %v54 = vld [vmem:[%s1] sm:$0xf]
  %v55 = vld [vmem:[%s1 + $0x4] sm:$0xf]
  %v56 = vld [vmem:[%s1 + $0x8] sm:$0xf]
  %v57 = vld [vmem:[%s1 + $0xc] sm:$0xf]
  %v58 = vld [vmem:[%s1 + $0x10] sm:$0xf]
  %v59 = vld [vmem:[%s1 + $0x14] sm:$0xf]
  %v60 = vld [vmem:[%s1 + $0x18] sm:$0xf]
  %v61 = vld [vmem:[%s1 + $0x1c] sm:$0xf]
  %v62 = vld [vmem:[%s1 + $0x20] sm:$0xf]
  %v63 = vld [vmem:[%s1 + $0x24] sm:$0xf]
  %v64 = vld [vmem:[%s1 + $0x28] sm:$0xf]
  %v65 = vld [vmem:[%s1 + $0x2c] sm:$0xf]
  %v66 = vld [vmem:[%s1 + $0x30] sm:$0xf]
  %v67 = vld [vmem:[%s1 + $0x34] sm:$0xf]
  %v68 = vld [vmem:[%s1 + $0x38] sm:$0xf]
  %v69 = vld [vmem:[%s1 + $0x3c] sm:$0xf]
  %v70 = vld [vmem:[%s0] sm:$0xff]
  %v71 = vld [vmem:[%s0 + $0x8] sm:$0xff]
  %v72 = vld [vmem:[%s0 + $0x10] sm:$0xff]
  %v73 = vld [vmem:[%s0 + $0x18] sm:$0xff]
  %v74 = vld [vmem:[%s0 + $0x20] sm:$0xff]
  %v75 = vld [vmem:[%s0 + $0x28] sm:$0xff]
  %v76 = vld [vmem:[%s0 + $0x30] sm:$0xff]
  %v77 = vld [vmem:[%s0 + $0x38] sm:$0xff]
  %v78 = vld [vmem:[%s0 + $0x40] sm:$0xff]
  %v79 = vld [vmem:[%s0 + $0x48] sm:$0xff]
  %v80 = vld [vmem:[%s0 + $0x50] sm:$0xff]
  %v81 = vld [vmem:[%s0 + $0x58] sm:$0xff]
  %v82 = vld [vmem:[%s0 + $0x60] sm:$0xff]
  %v83 = vld [vmem:[%s0 + $0x68] sm:$0xff]
  %v84 = vld [vmem:[%s0 + $0x70] sm:$0xff]
  %v85 = vld [vmem:[%s0 + $0x78] sm:$0xff]
  %v86 = vld [vmem:[#allocation2] sm:$0xff]
  %v87 = vld [vmem:[#allocation2 + $0x8] sm:$0xff]
  %v88 = vpack.c.bf16 %v87, %v86
  %v105 = vunpack.c.l.b16 %v54
  %v106 = vunpack.c.l.b16 %v55
  %v107 = vunpack.c.l.b16 %v56
  %v108 = vunpack.c.l.b16 %v57
  %v109 = vunpack.c.l.b16 %v58
  %v110 = vunpack.c.l.b16 %v59
  %v111 = vunpack.c.l.b16 %v60
  %v112 = vunpack.c.l.b16 %v61
  %v113 = vunpack.c.l.b16 %v62
  %v114 = vunpack.c.l.b16 %v63
  %v115 = vunpack.c.l.b16 %v64
  %v116 = vunpack.c.l.b16 %v65
  %v117 = vunpack.c.l.b16 %v66
  %v118 = vunpack.c.l.b16 %v67
  %v119 = vunpack.c.l.b16 %v68
  %v120 = vunpack.c.l.b16 %v69
  %v121 = vpack.c.b16 %v106, %v105
  %v122 = vpack.c.b16 %v108, %v107
  %v123 = vpack.c.b16 %v110, %v109
  %v124 = vpack.c.b16 %v112, %v111
  %v125 = vpack.c.b16 %v114, %v113
  %v126 = vpack.c.b16 %v116, %v115
  %v127 = vpack.c.b16 %v118, %v117
  %v128 = vpack.c.b16 %v120, %v119
  %137 = vmatprep.subr.bf16.mxu0 0
  %138 = vmatpush1.bf16.msra.mxu0 %v128
  %139 = vmatprep.subr.bf16.mxu0 0
  %140 = vmatpush1.bf16.msra.mxu0 %v127
  %141 = vmatprep.subr.bf16.mxu0 0
  %142 = vmatpush1.bf16.msra.mxu0 %v126
  %143 = vmatprep.subr.bf16.mxu0 0
  %144 = vmatpush1.bf16.msra.mxu0 %v125
  %145 = vmatprep.subr.bf16.mxu0 0
  %146 = vmatpush1.bf16.msra.mxu0 %v124
  %147 = vmatprep.subr.bf16.mxu0 0
  %148 = vmatpush1.bf16.msra.mxu0 %v123
  %149 = vmatprep.subr.bf16.mxu0 0
  %150 = vmatpush1.bf16.msra.mxu0 %v122
  %151 = vmatprep.subr.bf16.mxu0 0
  %152 = vmatpush1.bf16.msra.mxu0 %v121
  %153 = vmatprep.subr.bf16.mxu0 0
  %154 = vmatpush2.bf16.msra.mxu0 0
  %155 = vmatprep.subr.bf16.mxu0 0
  %156 = vmatpush2.bf16.msra.mxu0 0
  %157 = vmatprep.subr.bf16.mxu0 0
  %158 = vmatpush2.bf16.msra.mxu0 0
  %159 = vmatprep.subr.bf16.mxu0 0
  %160 = vmatpush2.bf16.msra.mxu0 0
  %161 = vmatprep.subr.bf16.mxu0 0
  %162 = vmatpush2.bf16.msra.mxu0 0
  %163 = vmatprep.subr.bf16.mxu0 0
  %164 = vmatpush2.bf16.msra.mxu0 0
  %165 = vmatprep.subr.bf16.mxu0 0
  %166 = vmatpush2.bf16.msra.mxu0 0
  %167 = vmatprep.subr.bf16.mxu0 0
  %168 = vmatpush2.bf16.msra.mxu0 0
  %169 = vmatprep.mubr.bf16.mxu0 0
  %170 = vmatmul.mubr.bf16.gmra.mxu0 %v88
  %v171 = vpop.f32.mrf.mxu0
  %v172 = vadd.f32 0.0, %v171
  %v173 = vpop.f32.mrf.mxu0
  %v174 = vpop.f32.mrf.mxu0
  %v175 = vadd.f32 0.0, %v174
  %v176 = vpop.f32.mrf.mxu0
  %177 = vdwg.mxu0
  %v178 = vadd.f32 %v70, %v172
  %v179 = vadd.f32 %v71, %v175
  %v180 = vtanh.pop %v178
  %v181 = vtanh.pop %v179
  %v182 = vpack.c.bf16 %v181, %v180
  %v184 = vunpack.c.l.b16 %v182
  %v185 = vunpack.c.h.b16 %v182
  %v186 = vpack.c.b16 %v184, %v184
  %v187 = vpack.c.b16 %v185, %v185
  %190 = vst [vmem:[#allocation3] sm:$0xf] %v186
  %191 = vst [vmem:[#allocation3 + $0x4] sm:$0xf] %v187
  %192 = vmatprep.subr.bf16.mxu0 0
  %193 = vmatpush1.bf16.msra.mxu0 %v128
  %194 = vmatprep.subr.bf16.mxu0 0
  %195 = vmatpush1.bf16.msra.mxu0 %v127
  %196 = vmatprep.subr.bf16.mxu0 0
  %197 = vmatpush1.bf16.msra.mxu0 %v126
  %198 = vmatprep.subr.bf16.mxu0 0
  %199 = vmatpush1.bf16.msra.mxu0 %v125
  %200 = vmatprep.subr.bf16.mxu0 0
  %201 = vmatpush1.bf16.msra.mxu0 %v124
  %202 = vmatprep.subr.bf16.mxu0 0
  %203 = vmatpush1.bf16.msra.mxu0 %v123
  %204 = vmatprep.subr.bf16.mxu0 0
  %205 = vmatpush1.bf16.msra.mxu0 %v122
  %206 = vmatprep.subr.bf16.mxu0 0
  %207 = vmatpush1.bf16.msra.mxu0 %v121
  %208 = vmatprep.subr.bf16.mxu0 0
  %209 = vmatpush2.bf16.msra.mxu0 0
  %210 = vmatprep.subr.bf16.mxu0 0
  %211 = vmatpush2.bf16.msra.mxu0 0
  %212 = vmatprep.subr.bf16.mxu0 0
  %213 = vmatpush2.bf16.msra.mxu0 0
  %214 = vmatprep.subr.bf16.mxu0 0
  %215 = vmatpush2.bf16.msra.mxu0 0
  %216 = vmatprep.subr.bf16.mxu0 0
  %217 = vmatpush2.bf16.msra.mxu0 0
  %218 = vmatprep.subr.bf16.mxu0 0
  %219 = vmatpush2.bf16.msra.mxu0 0
  %220 = vmatprep.subr.bf16.mxu0 0
  %221 = vmatpush2.bf16.msra.mxu0 0
  %222 = vmatprep.subr.bf16.mxu0 0
  %223 = vmatpush2.bf16.msra.mxu0 0
  %224 = vmatprep.mubr.bf16.mxu0 0
  %225 = vmatmul.mubr.bf16.gmra.mxu0 %v182
  %v226 = vpop.f32.mrf.mxu0
  %v227 = vadd.f32 0.0, %v226
  %v228 = vpop.f32.mrf.mxu0
  %v229 = vpop.f32.mrf.mxu0
  %v230 = vadd.f32 0.0, %v229
  %v231 = vpop.f32.mrf.mxu0
  %232 = vdwg.mxu0
  %v233 = vadd.f32 %v72, %v227
  %v234 = vadd.f32 %v73, %v230
  %v235 = vtanh.pop %v233
  %v236 = vtanh.pop %v234
  %v237 = vpack.c.bf16 %v236, %v235
  %v239 = vunpack.c.l.b16 %v237
  %v240 = vunpack.c.h.b16 %v237
  %v241 = vpack.c.b16 %v239, %v239
  %v242 = vpack.c.b16 %v240, %v240
  %s245 = scalar_lea.vmem [#allocation3], 8
  %246 = vst [vmem:[%s245] sm:$0xf] %v241
  %247 = vst [vmem:[%s245 + $0x4] sm:$0xf] %v242
  %248 = vmatprep.subr.bf16.mxu0 0
  %249 = vmatpush1.bf16.msra.mxu0 %v128
  %250 = vmatprep.subr.bf16.mxu0 0
  %251 = vmatpush1.bf16.msra.mxu0 %v127
  %252 = vmatprep.subr.bf16.mxu0 0
  %253 = vmatpush1.bf16.msra.mxu0 %v126
  %254 = vmatprep.subr.bf16.mxu0 0
  %255 = vmatpush1.bf16.msra.mxu0 %v125
  %256 = vmatprep.subr.bf16.mxu0 0
  %257 = vmatpush1.bf16.msra.mxu0 %v124
  %258 = vmatprep.subr.bf16.mxu0 0
  %259 = vmatpush1.bf16.msra.mxu0 %v123
  %260 = vmatprep.subr.bf16.mxu0 0
  %261 = vmatpush1.bf16.msra.mxu0 %v122
  %262 = vmatprep.subr.bf16.mxu0 0
  %263 = vmatpush1.bf16.msra.mxu0 %v121
  %264 = vmatprep.subr.bf16.mxu0 0
  %265 = vmatpush2.bf16.msra.mxu0 0
  %266 = vmatprep.subr.bf16.mxu0 0
  %267 = vmatpush2.bf16.msra.mxu0 0
  %268 = vmatprep.subr.bf16.mxu0 0
  %269 = vmatpush2.bf16.msra.mxu0 0
  %270 = vmatprep.subr.bf16.mxu0 0
  %271 = vmatpush2.bf16.msra.mxu0 0
  %272 = vmatprep.subr.bf16.mxu0 0
  %273 = vmatpush2.bf16.msra.mxu0 0
  %274 = vmatprep.subr.bf16.mxu0 0
  %275 = vmatpush2.bf16.msra.mxu0 0
  %276 = vmatprep.subr.bf16.mxu0 0
  %277 = vmatpush2.bf16.msra.mxu0 0
  %278 = vmatprep.subr.bf16.mxu0 0
  %279 = vmatpush2.bf16.msra.mxu0 0
  %280 = vmatprep.mubr.bf16.mxu0 0
  %281 = vmatmul.mubr.bf16.gmra.mxu0 %v237
  %v282 = vpop.f32.mrf.mxu0
  %v283 = vadd.f32 0.0, %v282
  %v284 = vpop.f32.mrf.mxu0
  %v285 = vpop.f32.mrf.mxu0
  %v286 = vadd.f32 0.0, %v285
  %v287 = vpop.f32.mrf.mxu0
  %288 = vdwg.mxu0
  %v289 = vadd.f32 %v74, %v283
  %v290 = vadd.f32 %v75, %v286
  %v291 = vtanh.pop %v289
  %v292 = vtanh.pop %v290
  %v293 = vpack.c.bf16 %v292, %v291
  %v295 = vunpack.c.l.b16 %v293
  %v296 = vunpack.c.h.b16 %v293
  %v297 = vpack.c.b16 %v295, %v295
  %v298 = vpack.c.b16 %v296, %v296
  %s301 = scalar_lea.vmem [#allocation3], 16
  %302 = vst [vmem:[%s301] sm:$0xf] %v297
  %303 = vst [vmem:[%s301 + $0x4] sm:$0xf] %v298
  %304 = vmatprep.subr.bf16.mxu0 0
  %305 = vmatpush1.bf16.msra.mxu0 %v128
  %306 = vmatprep.subr.bf16.mxu0 0
  %307 = vmatpush1.bf16.msra.mxu0 %v127
  %308 = vmatprep.subr.bf16.mxu0 0
  %309 = vmatpush1.bf16.msra.mxu0 %v126
  %310 = vmatprep.subr.bf16.mxu0 0
  %311 = vmatpush1.bf16.msra.mxu0 %v125
  %312 = vmatprep.subr.bf16.mxu0 0
  %313 = vmatpush1.bf16.msra.mxu0 %v124
  %314 = vmatprep.subr.bf16.mxu0 0
  %315 = vmatpush1.bf16.msra.mxu0 %v123
  %316 = vmatprep.subr.bf16.mxu0 0
  %317 = vmatpush1.bf16.msra.mxu0 %v122
  %318 = vmatprep.subr.bf16.mxu0 0
  %319 = vmatpush1.bf16.msra.mxu0 %v121
  %320 = vmatprep.subr.bf16.mxu0 0
  %321 = vmatpush2.bf16.msra.mxu0 0
  %322 = vmatprep.subr.bf16.mxu0 0
  %323 = vmatpush2.bf16.msra.mxu0 0
  %324 = vmatprep.subr.bf16.mxu0 0
  %325 = vmatpush2.bf16.msra.mxu0 0
  %326 = vmatprep.subr.bf16.mxu0 0
  %327 = vmatpush2.bf16.msra.mxu0 0
  %328 = vmatprep.subr.bf16.mxu0 0
  %329 = vmatpush2.bf16.msra.mxu0 0
  %330 = vmatprep.subr.bf16.mxu0 0
  %331 = vmatpush2.bf16.msra.mxu0 0
  %332 = vmatprep.subr.bf16.mxu0 0
  %333 = vmatpush2.bf16.msra.mxu0 0
  %334 = vmatprep.subr.bf16.mxu0 0
  %335 = vmatpush2.bf16.msra.mxu0 0
  %336 = vmatprep.mubr.bf16.mxu0 0
  %337 = vmatmul.mubr.bf16.gmra.mxu0 %v293
  %v338 = vpop.f32.mrf.mxu0
  %v339 = vadd.f32 0.0, %v338
  %v340 = vpop.f32.mrf.mxu0
  %v341 = vpop.f32.mrf.mxu0
  %v342 = vadd.f32 0.0, %v341
  %v343 = vpop.f32.mrf.mxu0
  %344 = vdwg.mxu0
  %v345 = vadd.f32 %v76, %v339
  %v346 = vadd.f32 %v77, %v342
  %v347 = vtanh.pop %v345
  %v348 = vtanh.pop %v346
  %v349 = vpack.c.bf16 %v348, %v347
  %v351 = vunpack.c.l.b16 %v349
  %v352 = vunpack.c.h.b16 %v349
  %v353 = vpack.c.b16 %v351, %v351
  %v354 = vpack.c.b16 %v352, %v352
  %s357 = scalar_lea.vmem [#allocation3], 24
  %358 = vst [vmem:[%s357] sm:$0xf] %v353
  %359 = vst [vmem:[%s357 + $0x4] sm:$0xf] %v354
  %360 = vmatprep.subr.bf16.mxu0 0
  %361 = vmatpush1.bf16.msra.mxu0 %v128
  %362 = vmatprep.subr.bf16.mxu0 0
  %363 = vmatpush1.bf16.msra.mxu0 %v127
  %364 = vmatprep.subr.bf16.mxu0 0
  %365 = vmatpush1.bf16.msra.mxu0 %v126
  %366 = vmatprep.subr.bf16.mxu0 0
  %367 = vmatpush1.bf16.msra.mxu0 %v125
  %368 = vmatprep.subr.bf16.mxu0 0
  %369 = vmatpush1.bf16.msra.mxu0 %v124
  %370 = vmatprep.subr.bf16.mxu0 0
  %371 = vmatpush1.bf16.msra.mxu0 %v123
  %372 = vmatprep.subr.bf16.mxu0 0
  %373 = vmatpush1.bf16.msra.mxu0 %v122
  %374 = vmatprep.subr.bf16.mxu0 0
  %375 = vmatpush1.bf16.msra.mxu0 %v121
  %376 = vmatprep.subr.bf16.mxu0 0
  %377 = vmatpush2.bf16.msra.mxu0 0
  %378 = vmatprep.subr.bf16.mxu0 0
  %379 = vmatpush2.bf16.msra.mxu0 0
  %380 = vmatprep.subr.bf16.mxu0 0
  %381 = vmatpush2.bf16.msra.mxu0 0
  %382 = vmatprep.subr.bf16.mxu0 0
  %383 = vmatpush2.bf16.msra.mxu0 0
  %384 = vmatprep.subr.bf16.mxu0 0
  %385 = vmatpush2.bf16.msra.mxu0 0
  %386 = vmatprep.subr.bf16.mxu0 0
  %387 = vmatpush2.bf16.msra.mxu0 0
  %388 = vmatprep.subr.bf16.mxu0 0
  %389 = vmatpush2.bf16.msra.mxu0 0
  %390 = vmatprep.subr.bf16.mxu0 0
  %391 = vmatpush2.bf16.msra.mxu0 0
  %392 = vmatprep.mubr.bf16.mxu0 0
  %393 = vmatmul.mubr.bf16.gmra.mxu0 %v349
  %v394 = vpop.f32.mrf.mxu0
  %v395 = vadd.f32 0.0, %v394
  %v396 = vpop.f32.mrf.mxu0
  %v397 = vpop.f32.mrf.mxu0
  %v398 = vadd.f32 0.0, %v397
  %v399 = vpop.f32.mrf.mxu0
  %400 = vdwg.mxu0
  %v401 = vadd.f32 %v78, %v395
  %v402 = vadd.f32 %v79, %v398
  %v403 = vtanh.pop %v401
  %v404 = vtanh.pop %v402
  %v405 = vpack.c.bf16 %v404, %v403
  %v407 = vunpack.c.l.b16 %v405
  %v408 = vunpack.c.h.b16 %v405
  %v409 = vpack.c.b16 %v407, %v407
  %v410 = vpack.c.b16 %v408, %v408
  %s413 = scalar_lea.vmem [#allocation3], 32
  %414 = vst [vmem:[%s413] sm:$0xf] %v409
  %415 = vst [vmem:[%s413 + $0x4] sm:$0xf] %v410
  %416 = vmatprep.subr.bf16.mxu0 0
  %417 = vmatpush1.bf16.msra.mxu0 %v128
  %418 = vmatprep.subr.bf16.mxu0 0
  %419 = vmatpush1.bf16.msra.mxu0 %v127
  %420 = vmatprep.subr.bf16.mxu0 0
  %421 = vmatpush1.bf16.msra.mxu0 %v126
  %422 = vmatprep.subr.bf16.mxu0 0
  %423 = vmatpush1.bf16.msra.mxu0 %v125
  %424 = vmatprep.subr.bf16.mxu0 0
  %425 = vmatpush1.bf16.msra.mxu0 %v124
  %426 = vmatprep.subr.bf16.mxu0 0
  %427 = vmatpush1.bf16.msra.mxu0 %v123
  %428 = vmatprep.subr.bf16.mxu0 0
  %429 = vmatpush1.bf16.msra.mxu0 %v122
  %430 = vmatprep.subr.bf16.mxu0 0
  %431 = vmatpush1.bf16.msra.mxu0 %v121
  %432 = vmatprep.subr.bf16.mxu0 0
  %433 = vmatpush2.bf16.msra.mxu0 0
  %434 = vmatprep.subr.bf16.mxu0 0
  %435 = vmatpush2.bf16.msra.mxu0 0
  %436 = vmatprep.subr.bf16.mxu0 0
  %437 = vmatpush2.bf16.msra.mxu0 0
  %438 = vmatprep.subr.bf16.mxu0 0
  %439 = vmatpush2.bf16.msra.mxu0 0
  %440 = vmatprep.subr.bf16.mxu0 0
  %441 = vmatpush2.bf16.msra.mxu0 0
  %442 = vmatprep.subr.bf16.mxu0 0
  %443 = vmatpush2.bf16.msra.mxu0 0
  %444 = vmatprep.subr.bf16.mxu0 0
  %445 = vmatpush2.bf16.msra.mxu0 0
  %446 = vmatprep.subr.bf16.mxu0 0
  %447 = vmatpush2.bf16.msra.mxu0 0
  %448 = vmatprep.mubr.bf16.mxu0 0
  %449 = vmatmul.mubr.bf16.gmra.mxu0 %v405
  %v450 = vpop.f32.mrf.mxu0
  %v451 = vadd.f32 0.0, %v450
  %v452 = vpop.f32.mrf.mxu0
  %v453 = vpop.f32.mrf.mxu0
  %v454 = vadd.f32 0.0, %v453
  %v455 = vpop.f32.mrf.mxu0
  %456 = vdwg.mxu0
  %v457 = vadd.f32 %v80, %v451
  %v458 = vadd.f32 %v81, %v454
  %v459 = vtanh.pop %v457
  %v460 = vtanh.pop %v458
  %v461 = vpack.c.bf16 %v460, %v459
  %v463 = vunpack.c.l.b16 %v461
  %v464 = vunpack.c.h.b16 %v461
  %v465 = vpack.c.b16 %v463, %v463
  %v466 = vpack.c.b16 %v464, %v464
  %s469 = scalar_lea.vmem [#allocation3], 40
  %470 = vst [vmem:[%s469] sm:$0xf] %v465
  %471 = vst [vmem:[%s469 + $0x4] sm:$0xf] %v466
  %472 = vmatprep.subr.bf16.mxu0 0
  %473 = vmatpush1.bf16.msra.mxu0 %v128
  %474 = vmatprep.subr.bf16.mxu0 0
  %475 = vmatpush1.bf16.msra.mxu0 %v127
  %476 = vmatprep.subr.bf16.mxu0 0
  %477 = vmatpush1.bf16.msra.mxu0 %v126
  %478 = vmatprep.subr.bf16.mxu0 0
  %479 = vmatpush1.bf16.msra.mxu0 %v125
  %480 = vmatprep.subr.bf16.mxu0 0
  %481 = vmatpush1.bf16.msra.mxu0 %v124
  %482 = vmatprep.subr.bf16.mxu0 0
  %483 = vmatpush1.bf16.msra.mxu0 %v123
  %484 = vmatprep.subr.bf16.mxu0 0
  %485 = vmatpush1.bf16.msra.mxu0 %v122
  %486 = vmatprep.subr.bf16.mxu0 0
  %487 = vmatpush1.bf16.msra.mxu0 %v121
  %488 = vmatprep.subr.bf16.mxu0 0
  %489 = vmatpush2.bf16.msra.mxu0 0
  %490 = vmatprep.subr.bf16.mxu0 0
  %491 = vmatpush2.bf16.msra.mxu0 0
  %492 = vmatprep.subr.bf16.mxu0 0
  %493 = vmatpush2.bf16.msra.mxu0 0
  %494 = vmatprep.subr.bf16.mxu0 0
  %495 = vmatpush2.bf16.msra.mxu0 0
  %496 = vmatprep.subr.bf16.mxu0 0
  %497 = vmatpush2.bf16.msra.mxu0 0
  %498 = vmatprep.subr.bf16.mxu0 0
  %499 = vmatpush2.bf16.msra.mxu0 0
  %500 = vmatprep.subr.bf16.mxu0 0
  %501 = vmatpush2.bf16.msra.mxu0 0
  %502 = vmatprep.subr.bf16.mxu0 0
  %503 = vmatpush2.bf16.msra.mxu0 0
  %504 = vmatprep.mubr.bf16.mxu0 0
  %505 = vmatmul.mubr.bf16.gmra.mxu0 %v461
  %v506 = vpop.f32.mrf.mxu0
  %v507 = vadd.f32 0.0, %v506
  %v508 = vpop.f32.mrf.mxu0
  %v509 = vpop.f32.mrf.mxu0
  %v510 = vadd.f32 0.0, %v509
  %v511 = vpop.f32.mrf.mxu0
  %512 = vdwg.mxu0
  %v513 = vadd.f32 %v82, %v507
  %v514 = vadd.f32 %v83, %v510
  %v515 = vtanh.pop %v513
  %v516 = vtanh.pop %v514
  %v517 = vpack.c.bf16 %v516, %v515
  %v519 = vunpack.c.l.b16 %v517
  %v520 = vunpack.c.h.b16 %v517
  %v521 = vpack.c.b16 %v519, %v519
  %v522 = vpack.c.b16 %v520, %v520
  %s525 = scalar_lea.vmem [#allocation3], 48
  %526 = vst [vmem:[%s525] sm:$0xf] %v521
  %527 = vst [vmem:[%s525 + $0x4] sm:$0xf] %v522
  %528 = vmatprep.subr.bf16.mxu0 0
  %529 = vmatpush1.bf16.msra.mxu0 %v128
  %530 = vmatprep.subr.bf16.mxu0 0
  %531 = vmatpush1.bf16.msra.mxu0 %v127
  %532 = vmatprep.subr.bf16.mxu0 0
  %533 = vmatpush1.bf16.msra.mxu0 %v126
  %534 = vmatprep.subr.bf16.mxu0 0
  %535 = vmatpush1.bf16.msra.mxu0 %v125
  %536 = vmatprep.subr.bf16.mxu0 0
  %537 = vmatpush1.bf16.msra.mxu0 %v124
  %538 = vmatprep.subr.bf16.mxu0 0
  %539 = vmatpush1.bf16.msra.mxu0 %v123
  %540 = vmatprep.subr.bf16.mxu0 0
  %541 = vmatpush1.bf16.msra.mxu0 %v122
  %542 = vmatprep.subr.bf16.mxu0 0
  %543 = vmatpush1.bf16.msra.mxu0 %v121
  %544 = vmatprep.subr.bf16.mxu0 0
  %545 = vmatpush2.bf16.msra.mxu0 0
  %546 = vmatprep.subr.bf16.mxu0 0
  %547 = vmatpush2.bf16.msra.mxu0 0
  %548 = vmatprep.subr.bf16.mxu0 0
  %549 = vmatpush2.bf16.msra.mxu0 0
  %550 = vmatprep.subr.bf16.mxu0 0
  %551 = vmatpush2.bf16.msra.mxu0 0
  %552 = vmatprep.subr.bf16.mxu0 0
  %553 = vmatpush2.bf16.msra.mxu0 0
  %554 = vmatprep.subr.bf16.mxu0 0
  %555 = vmatpush2.bf16.msra.mxu0 0
  %556 = vmatprep.subr.bf16.mxu0 0
  %557 = vmatpush2.bf16.msra.mxu0 0
  %558 = vmatprep.subr.bf16.mxu0 0
  %559 = vmatpush2.bf16.msra.mxu0 0
  %560 = vmatprep.mubr.bf16.mxu0 0
  %561 = vmatmul.mubr.bf16.gmra.mxu0 %v517
  %v562 = vpop.f32.mrf.mxu0
  %v563 = vadd.f32 0.0, %v562
  %v564 = vpop.f32.mrf.mxu0
  %v565 = vpop.f32.mrf.mxu0
  %v566 = vadd.f32 0.0, %v565
  %v567 = vpop.f32.mrf.mxu0
  %568 = vdwg.mxu0
  %v569 = vadd.f32 %v84, %v563
  %v570 = vadd.f32 %v85, %v566
  %v571 = vtanh.pop %v569
  %v572 = vtanh.pop %v570
  %v573 = vpack.c.bf16 %v572, %v571
  %v575 = vunpack.c.l.b16 %v573
  %v576 = vunpack.c.h.b16 %v573
  %v577 = vpack.c.b16 %v575, %v575
  %v578 = vpack.c.b16 %v576, %v576
  %s581 = scalar_lea.vmem [#allocation3], 56
  %582 = vst [vmem:[%s581] sm:$0xf] %v577
  %583 = vst [vmem:[%s581 + $0x4] sm:$0xf] %v578
  %584 = vst [vmem:[#allocation2] sm:$0xff] %v571
  %585 = vst [vmem:[#allocation2 + $0x8] sm:$0xff] %v572
  %v586 = vld [vmem:[%s3] sm:$0xf]
  %v587 = vld [vmem:[%s3 + $0x4] sm:$0xf]
  %v588 = vld [vmem:[%s3 + $0x8] sm:$0xf]
  %v589 = vld [vmem:[%s3 + $0xc] sm:$0xf]
  %v590 = vld [vmem:[%s3 + $0x10] sm:$0xf]
  %v591 = vld [vmem:[%s3 + $0x14] sm:$0xf]
  %v592 = vld [vmem:[%s3 + $0x18] sm:$0xf]
  %v593 = vld [vmem:[%s3 + $0x1c] sm:$0xf]
  %v594 = vld [vmem:[%s3 + $0x20] sm:$0xf]
  %v595 = vld [vmem:[%s3 + $0x24] sm:$0xf]
  %v596 = vld [vmem:[%s3 + $0x28] sm:$0xf]
  %v597 = vld [vmem:[%s3 + $0x2c] sm:$0xf]
  %v598 = vld [vmem:[%s3 + $0x30] sm:$0xf]
  %v599 = vld [vmem:[%s3 + $0x34] sm:$0xf]
  %v600 = vld [vmem:[%s3 + $0x38] sm:$0xf]
  %v601 = vld [vmem:[%s3 + $0x3c] sm:$0xf]
  %v602 = vld [vmem:[#allocation3] sm:$0xf]
  %v603 = vld [vmem:[#allocation3 + $0x4] sm:$0xf]
  %v604 = vld [vmem:[#allocation3 + $0x8] sm:$0xf]
  %v605 = vld [vmem:[#allocation3 + $0xc] sm:$0xf]
  %v606 = vld [vmem:[#allocation3 + $0x10] sm:$0xf]
  %v607 = vld [vmem:[#allocation3 + $0x14] sm:$0xf]
  %v608 = vld [vmem:[#allocation3 + $0x18] sm:$0xf]
  %v609 = vld [vmem:[#allocation3 + $0x1c] sm:$0xf]
  %v610 = vld [vmem:[#allocation3 + $0x20] sm:$0xf]
  %v611 = vld [vmem:[#allocation3 + $0x24] sm:$0xf]
  %v612 = vld [vmem:[#allocation3 + $0x28] sm:$0xf]
  %v613 = vld [vmem:[#allocation3 + $0x2c] sm:$0xf]
  %v614 = vld [vmem:[#allocation3 + $0x30] sm:$0xf]
  %v615 = vld [vmem:[#allocation3 + $0x34] sm:$0xf]
  %v616 = vld [vmem:[#allocation3 + $0x38] sm:$0xf]
  %v617 = vld [vmem:[#allocation3 + $0x3c] sm:$0xf]
  %v618 = vld [vmem:[%s2] sm:$0xf]
  %v619 = vld [vmem:[%s2 + $0x4] sm:$0xf]
  %v620 = vld [vmem:[%s2 + $0x8] sm:$0xf]
  %v621 = vld [vmem:[%s2 + $0xc] sm:$0xf]
  %v622 = vld [vmem:[%s2 + $0x10] sm:$0xf]
  %v623 = vld [vmem:[%s2 + $0x14] sm:$0xf]
  %v624 = vld [vmem:[%s2 + $0x18] sm:$0xf]
  %v625 = vld [vmem:[%s2 + $0x1c] sm:$0xf]
  %v626 = vld [vmem:[%s2 + $0x20] sm:$0xf]
  %v627 = vld [vmem:[%s2 + $0x24] sm:$0xf]
  %v628 = vld [vmem:[%s2 + $0x28] sm:$0xf]
  %v629 = vld [vmem:[%s2 + $0x2c] sm:$0xf]
  %v630 = vld [vmem:[%s2 + $0x30] sm:$0xf]
  %v631 = vld [vmem:[%s2 + $0x34] sm:$0xf]
  %v632 = vld [vmem:[%s2 + $0x38] sm:$0xf]
  %v633 = vld [vmem:[%s2 + $0x3c] sm:$0xf]
  %v650 = vunpack.c.l.b16 %v602
  %v651 = vunpack.c.l.b16 %v603
  %v652 = vunpack.c.l.b16 %v604
  %v653 = vunpack.c.l.b16 %v605
  %v654 = vunpack.c.l.b16 %v606
  %v655 = vunpack.c.l.b16 %v607
  %v656 = vunpack.c.l.b16 %v608
  %v657 = vunpack.c.l.b16 %v609
  %v658 = vunpack.c.l.b16 %v610
  %v659 = vunpack.c.l.b16 %v611
  %v660 = vunpack.c.l.b16 %v612
  %v661 = vunpack.c.l.b16 %v613
  %v662 = vunpack.c.l.b16 %v614
  %v663 = vunpack.c.l.b16 %v615
  %v664 = vunpack.c.l.b16 %v616
  %v665 = vunpack.c.l.b16 %v617
  %v666 = vpack.c.b16 %v651, %v650
  %v667 = vpack.c.b16 %v653, %v652
  %v668 = vpack.c.b16 %v655, %v654
  %v669 = vpack.c.b16 %v657, %v656
  %v670 = vpack.c.b16 %v659, %v658
  %v671 = vpack.c.b16 %v661, %v660
  %v672 = vpack.c.b16 %v663, %v662
  %v673 = vpack.c.b16 %v665, %v664
  %v698 = vunpack.c.l.b16 %v618
  %v699 = vunpack.c.l.b16 %v619
  %v700 = vunpack.c.l.b16 %v620
  %v701 = vunpack.c.l.b16 %v621
  %v702 = vunpack.c.l.b16 %v622
  %v703 = vunpack.c.l.b16 %v623
  %v704 = vunpack.c.l.b16 %v624
  %v705 = vunpack.c.l.b16 %v625
  %v706 = vunpack.c.l.b16 %v626
  %v707 = vunpack.c.l.b16 %v627
  %v708 = vunpack.c.l.b16 %v628
  %v709 = vunpack.c.l.b16 %v629
  %v710 = vunpack.c.l.b16 %v630
  %v711 = vunpack.c.l.b16 %v631
  %v712 = vunpack.c.l.b16 %v632
  %v713 = vunpack.c.l.b16 %v633
  %v714 = vpack.c.b16 %v699, %v698
  %v715 = vpack.c.b16 %v701, %v700
  %v716 = vpack.c.b16 %v703, %v702
  %v717 = vpack.c.b16 %v705, %v704
  %v718 = vpack.c.b16 %v707, %v706
  %v719 = vpack.c.b16 %v709, %v708
  %v720 = vpack.c.b16 %v711, %v710
  %v721 = vpack.c.b16 %v713, %v712
  %730 = vmatprep.subr.bf16.mxu0 0
  %731 = vmatpush1.bf16.msra.mxu0 %v721
  %732 = vmatprep.subr.bf16.mxu0 0
  %733 = vmatpush1.bf16.msra.mxu0 %v720
  %734 = vmatprep.subr.bf16.mxu0 0
  %735 = vmatpush1.bf16.msra.mxu0 %v719
  %736 = vmatprep.subr.bf16.mxu0 0
  %737 = vmatpush1.bf16.msra.mxu0 %v718
  %738 = vmatprep.subr.bf16.mxu0 0
  %739 = vmatpush1.bf16.msra.mxu0 %v717
  %740 = vmatprep.subr.bf16.mxu0 0
  %741 = vmatpush1.bf16.msra.mxu0 %v716
  %742 = vmatprep.subr.bf16.mxu0 0
  %743 = vmatpush1.bf16.msra.mxu0 %v715
  %744 = vmatprep.subr.bf16.mxu0 0
  %745 = vmatpush1.bf16.msra.mxu0 %v714
  %746 = vmatprep.subr.bf16.mxu0 0
  %747 = vmatpush2.bf16.msra.mxu0 0
  %748 = vmatprep.subr.bf16.mxu0 0
  %749 = vmatpush2.bf16.msra.mxu0 0
  %750 = vmatprep.subr.bf16.mxu0 0
  %751 = vmatpush2.bf16.msra.mxu0 0
  %752 = vmatprep.subr.bf16.mxu0 0
  %753 = vmatpush2.bf16.msra.mxu0 0
  %754 = vmatprep.subr.bf16.mxu0 0
  %755 = vmatpush2.bf16.msra.mxu0 0
  %756 = vmatprep.subr.bf16.mxu0 0
  %757 = vmatpush2.bf16.msra.mxu0 0
  %758 = vmatprep.subr.bf16.mxu0 0
  %759 = vmatpush2.bf16.msra.mxu0 0
  %760 = vmatprep.subr.bf16.mxu0 0
  %761 = vmatpush2.bf16.msra.mxu0 0
  %762 = vmatprep.mubr.bf16.mxu0 0
  %763 = vmatmul.mubr.bf16.gmra.mxu0 %v666
  %v764 = vpop.f32.mrf.mxu0
  %v765 = vadd.f32 0.0, %v764
  %v766 = vpop.f32.mrf.mxu0
  %v767 = vpop.f32.mrf.mxu0
  %v768 = vadd.f32 0.0, %v767
  %v769 = vpop.f32.mrf.mxu0
  %770 = vmatprep.mubr.bf16.mxu0 0
  %771 = vmatmul.mubr.bf16.gmra.mxu0 %v667
  %v772 = vpop.f32.mrf.mxu0
  %v773 = vadd.f32 0.0, %v772
  %v774 = vpop.f32.mrf.mxu0
  %v775 = vpop.f32.mrf.mxu0
  %v776 = vadd.f32 0.0, %v775
  %v777 = vpop.f32.mrf.mxu0
  %778 = vmatprep.mubr.bf16.mxu0 0
  %779 = vmatmul.mubr.bf16.gmra.mxu0 %v668
  %v780 = vpop.f32.mrf.mxu0
  %v781 = vadd.f32 0.0, %v780
  %v782 = vpop.f32.mrf.mxu0
  %v783 = vpop.f32.mrf.mxu0
  %v784 = vadd.f32 0.0, %v783
  %v785 = vpop.f32.mrf.mxu0
  %786 = vmatprep.mubr.bf16.mxu0 0
  %787 = vmatmul.mubr.bf16.gmra.mxu0 %v669
  %v788 = vpop.f32.mrf.mxu0
  %v789 = vadd.f32 0.0, %v788
  %v790 = vpop.f32.mrf.mxu0
  %v791 = vpop.f32.mrf.mxu0
  %v792 = vadd.f32 0.0, %v791
  %v793 = vpop.f32.mrf.mxu0
  %794 = vmatprep.mubr.bf16.mxu0 0
  %795 = vmatmul.mubr.bf16.gmra.mxu0 %v670
  %v796 = vpop.f32.mrf.mxu0
  %v797 = vadd.f32 0.0, %v796
  %v798 = vpop.f32.mrf.mxu0
  %v799 = vpop.f32.mrf.mxu0
  %v800 = vadd.f32 0.0, %v799
  %v801 = vpop.f32.mrf.mxu0
  %802 = vmatprep.mubr.bf16.mxu0 0
  %803 = vmatmul.mubr.bf16.gmra.mxu0 %v671
  %v804 = vpop.f32.mrf.mxu0
  %v805 = vadd.f32 0.0, %v804
  %v806 = vpop.f32.mrf.mxu0
  %v807 = vpop.f32.mrf.mxu0
  %v808 = vadd.f32 0.0, %v807
  %v809 = vpop.f32.mrf.mxu0
  %810 = vmatprep.mubr.bf16.mxu0 0
  %811 = vmatmul.mubr.bf16.gmra.mxu0 %v672
  %v812 = vpop.f32.mrf.mxu0
  %v813 = vadd.f32 0.0, %v812
  %v814 = vpop.f32.mrf.mxu0
  %v815 = vpop.f32.mrf.mxu0
  %v816 = vadd.f32 0.0, %v815
  %v817 = vpop.f32.mrf.mxu0
  %818 = vmatprep.mubr.bf16.mxu0 0
  %819 = vmatmul.mubr.bf16.gmra.mxu0 %v673
  %v820 = vpop.f32.mrf.mxu0
  %v821 = vadd.f32 0.0, %v820
  %v822 = vpop.f32.mrf.mxu0
  %v823 = vpop.f32.mrf.mxu0
  %v824 = vadd.f32 0.0, %v823
  %v825 = vpop.f32.mrf.mxu0
  %826 = vdwg.mxu0
  %v827 = vld [vmem:[%s4] sm:$0x1]
  %v829 = vlaneseq
  %v830 = vshrl.u32 %v829, 7
  %v831 = vsub.s32 0, %v830
  %v832 = vrot.slane %v827, %v831
  %v834 = vadd.f32 %v765, %v832
  %v835 = vadd.f32 %v768, %v832
  %v836 = vadd.f32 %v773, %v832
  %v837 = vadd.f32 %v776, %v832
  %v838 = vadd.f32 %v781, %v832
  %v839 = vadd.f32 %v784, %v832
  %v840 = vadd.f32 %v789, %v832
  %v841 = vadd.f32 %v792, %v832
  %v842 = vadd.f32 %v797, %v832
  %v843 = vadd.f32 %v800, %v832
  %v844 = vadd.f32 %v805, %v832
  %v845 = vadd.f32 %v808, %v832
  %v846 = vadd.f32 %v813, %v832
  %v847 = vadd.f32 %v816, %v832
  %v848 = vadd.f32 %v821, %v832
  %v849 = vadd.f32 %v824, %v832
  %s850 = scalar_lea.vmem [#allocation2], 16
  %v851 = vld [vmem:[%s850] sm:$0xff]
  %v852 = vld [vmem:[%s850 + $0x8] sm:$0xff]
  %v853 = vpack.c.bf16 %v852, %v851
  %v870 = vunpack.c.l.b16 %v586
  %v871 = vunpack.c.l.b16 %v587
  %v872 = vunpack.c.l.b16 %v588
  %v873 = vunpack.c.l.b16 %v589
  %v874 = vunpack.c.l.b16 %v590
  %v875 = vunpack.c.l.b16 %v591
  %v876 = vunpack.c.l.b16 %v592
  %v877 = vunpack.c.l.b16 %v593
  %v878 = vunpack.c.l.b16 %v594
  %v879 = vunpack.c.l.b16 %v595
  %v880 = vunpack.c.l.b16 %v596
  %v881 = vunpack.c.l.b16 %v597
  %v882 = vunpack.c.l.b16 %v598
  %v883 = vunpack.c.l.b16 %v599
  %v884 = vunpack.c.l.b16 %v600
  %v885 = vunpack.c.l.b16 %v601
  %v886 = vpack.c.b16 %v871, %v870
  %v887 = vpack.c.b16 %v873, %v872
  %v888 = vpack.c.b16 %v875, %v874
  %v889 = vpack.c.b16 %v877, %v876
  %v890 = vpack.c.b16 %v879, %v878
  %v891 = vpack.c.b16 %v881, %v880
  %v892 = vpack.c.b16 %v883, %v882
  %v893 = vpack.c.b16 %v885, %v884
  %902 = vmatprep.subr.bf16.mxu0 0
  %903 = vmatpush1.bf16.msra.mxu0 %v893
  %904 = vmatprep.subr.bf16.mxu0 0
  %905 = vmatpush1.bf16.msra.mxu0 %v892
  %906 = vmatprep.subr.bf16.mxu0 0
  %907 = vmatpush1.bf16.msra.mxu0 %v891
  %908 = vmatprep.subr.bf16.mxu0 0
  %909 = vmatpush1.bf16.msra.mxu0 %v890
  %910 = vmatprep.subr.bf16.mxu0 0
  %911 = vmatpush1.bf16.msra.mxu0 %v889
  %912 = vmatprep.subr.bf16.mxu0 0
  %913 = vmatpush1.bf16.msra.mxu0 %v888
  %914 = vmatprep.subr.bf16.mxu0 0
  %915 = vmatpush1.bf16.msra.mxu0 %v887
  %916 = vmatprep.subr.bf16.mxu0 0
  %917 = vmatpush1.bf16.msra.mxu0 %v886
  %918 = vmatprep.subr.bf16.mxu0 0
  %919 = vmatpush2.bf16.msra.mxu0 0
  %920 = vmatprep.subr.bf16.mxu0 0
  %921 = vmatpush2.bf16.msra.mxu0 0
  %922 = vmatprep.subr.bf16.mxu0 0
  %923 = vmatpush2.bf16.msra.mxu0 0
  %924 = vmatprep.subr.bf16.mxu0 0
  %925 = vmatpush2.bf16.msra.mxu0 0
  %926 = vmatprep.subr.bf16.mxu0 0
  %927 = vmatpush2.bf16.msra.mxu0 0
  %928 = vmatprep.subr.bf16.mxu0 0
  %929 = vmatpush2.bf16.msra.mxu0 0
  %930 = vmatprep.subr.bf16.mxu0 0
  %931 = vmatpush2.bf16.msra.mxu0 0
  %932 = vmatprep.subr.bf16.mxu0 0
  %933 = vmatpush2.bf16.msra.mxu0 0
  %934 = vmatprep.mubr.bf16.mxu0 0
  %935 = vmatmul.mubr.bf16.gmra.mxu0 %v853
  %v936 = vpop.f32.mrf.mxu0
  %v937 = vadd.f32 0.0, %v936
  %v938 = vpop.f32.mrf.mxu0
  %v939 = vpop.f32.mrf.mxu0
  %v940 = vadd.f32 0.0, %v939
  %v941 = vpop.f32.mrf.mxu0
  %942 = vdwg.mxu0
  %v943 = vadd.f32 %v834, %v937
  %v944 = vadd.f32 %v835, %v940
  %v945 = vtanh.pop %v943
  %v946 = vtanh.pop %v944
  %v947 = vpack.c.bf16 %v946, %v945
  %v949 = vlaneseq
  %v950 = vshrl.u32 %v949, 7
  %v951 = vsub.s32 0, %v950
  %v952 = vrot.slane %v53, %v951
  %v970 = vunpack.c.l.b16 %v37
  %v971 = vunpack.c.l.b16 %v38
  %v972 = vunpack.c.l.b16 %v39
  %v973 = vunpack.c.l.b16 %v40
  %v974 = vunpack.c.l.b16 %v41
  %v975 = vunpack.c.l.b16 %v42
  %v976 = vunpack.c.l.b16 %v43
  %v977 = vunpack.c.l.b16 %v44
  %v978 = vunpack.c.l.b16 %v45
  %v979 = vunpack.c.l.b16 %v46
  %v980 = vunpack.c.l.b16 %v47
  %v981 = vunpack.c.l.b16 %v48
  %v982 = vunpack.c.l.b16 %v49
  %v983 = vunpack.c.l.b16 %v50
  %v984 = vunpack.c.l.b16 %v51
  %v985 = vunpack.c.l.b16 %v52
  %v986 = vpack.c.b16 %v971, %v970
  %v987 = vpack.c.b16 %v973, %v972
  %v988 = vpack.c.b16 %v975, %v974
  %v989 = vpack.c.b16 %v977, %v976
  %v990 = vpack.c.b16 %v979, %v978
  %v991 = vpack.c.b16 %v981, %v980
  %v992 = vpack.c.b16 %v983, %v982
  %v993 = vpack.c.b16 %v985, %v984
  %1002 = vmatprep.subr.bf16.mxu0 0
  %1003 = vmatpush1.bf16.msra.mxu0 %v993
  %1004 = vmatprep.subr.bf16.mxu0 0
  %1005 = vmatpush1.bf16.msra.mxu0 %v992
  %1006 = vmatprep.subr.bf16.mxu0 0
  %1007 = vmatpush1.bf16.msra.mxu0 %v991
  %1008 = vmatprep.subr.bf16.mxu0 0
  %1009 = vmatpush1.bf16.msra.mxu0 %v990
  %1010 = vmatprep.subr.bf16.mxu0 0
  %1011 = vmatpush1.bf16.msra.mxu0 %v989
  %1012 = vmatprep.subr.bf16.mxu0 0
  %1013 = vmatpush1.bf16.msra.mxu0 %v988
  %1014 = vmatprep.subr.bf16.mxu0 0
  %1015 = vmatpush1.bf16.msra.mxu0 %v987
  %1016 = vmatprep.subr.bf16.mxu0 0
  %1017 = vmatpush1.bf16.msra.mxu0 %v986
  %1018 = vmatprep.subr.bf16.mxu0 0
  %1019 = vmatpush2.bf16.msra.mxu0 0
  %1020 = vmatprep.subr.bf16.mxu0 0
  %1021 = vmatpush2.bf16.msra.mxu0 0
  %1022 = vmatprep.subr.bf16.mxu0 0
  %1023 = vmatpush2.bf16.msra.mxu0 0
  %1024 = vmatprep.subr.bf16.mxu0 0
  %1025 = vmatpush2.bf16.msra.mxu0 0
  %1026 = vmatprep.subr.bf16.mxu0 0
  %1027 = vmatpush2.bf16.msra.mxu0 0
  %1028 = vmatprep.subr.bf16.mxu0 0
  %1029 = vmatpush2.bf16.msra.mxu0 0
  %1030 = vmatprep.subr.bf16.mxu0 0
  %1031 = vmatpush2.bf16.msra.mxu0 0
  %1032 = vmatprep.subr.bf16.mxu0 0
  %1033 = vmatpush2.bf16.msra.mxu0 0
  %1034 = vmatprep.mubr.bf16.mxu0 0
  %1035 = vmatmul.mubr.bf16.gmra.mxu0 %v947
  %v1036 = vpop.f32.mrf.mxu0
  %v1037 = vadd.f32 %v952, %v1036
  %v1038 = vpop.f32.mrf.mxu0
  %v1039 = vpop.f32.mrf.mxu0
  %v1040 = vadd.f32 %v952, %v1039
  %v1041 = vpop.f32.mrf.mxu0
  %1042 = vdwg.mxu0
  %1043 = vst [vmem:[%s7] sm:$0xff] %v1037
  %1044 = vst [vmem:[%s7 + $0x8] sm:$0xff] %v1040
  %1045 = vmatprep.subr.bf16.mxu0 0
  %1046 = vmatpush1.bf16.msra.mxu0 %v893
  %1047 = vmatprep.subr.bf16.mxu0 0
  %1048 = vmatpush1.bf16.msra.mxu0 %v892
  %1049 = vmatprep.subr.bf16.mxu0 0
  %1050 = vmatpush1.bf16.msra.mxu0 %v891
  %1051 = vmatprep.subr.bf16.mxu0 0
  %1052 = vmatpush1.bf16.msra.mxu0 %v890
  %1053 = vmatprep.subr.bf16.mxu0 0
  %1054 = vmatpush1.bf16.msra.mxu0 %v889
  %1055 = vmatprep.subr.bf16.mxu0 0
  %1056 = vmatpush1.bf16.msra.mxu0 %v888
  %1057 = vmatprep.subr.bf16.mxu0 0
  %1058 = vmatpush1.bf16.msra.mxu0 %v887
  %1059 = vmatprep.subr.bf16.mxu0 0
  %1060 = vmatpush1.bf16.msra.mxu0 %v886
  %1061 = vmatprep.subr.bf16.mxu0 0
  %1062 = vmatpush2.bf16.msra.mxu0 0
  %1063 = vmatprep.subr.bf16.mxu0 0
  %1064 = vmatpush2.bf16.msra.mxu0 0
  %1065 = vmatprep.subr.bf16.mxu0 0
  %1066 = vmatpush2.bf16.msra.mxu0 0
  %1067 = vmatprep.subr.bf16.mxu0 0
  %1068 = vmatpush2.bf16.msra.mxu0 0
  %1069 = vmatprep.subr.bf16.mxu0 0
  %1070 = vmatpush2.bf16.msra.mxu0 0
  %1071 = vmatprep.subr.bf16.mxu0 0
  %1072 = vmatpush2.bf16.msra.mxu0 0
  %1073 = vmatprep.subr.bf16.mxu0 0
  %1074 = vmatpush2.bf16.msra.mxu0 0
  %1075 = vmatprep.subr.bf16.mxu0 0
  %1076 = vmatpush2.bf16.msra.mxu0 0
  %1077 = vmatprep.mubr.bf16.mxu0 0
  %1078 = vmatmul.mubr.bf16.gmra.mxu0 %v947
  %v1079 = vpop.f32.mrf.mxu0
  %v1080 = vadd.f32 0.0, %v1079
  %v1081 = vpop.f32.mrf.mxu0
  %v1082 = vpop.f32.mrf.mxu0
  %v1083 = vadd.f32 0.0, %v1082
  %v1084 = vpop.f32.mrf.mxu0
  %1085 = vdwg.mxu0
  %v1086 = vadd.f32 %v836, %v1080
  %v1087 = vadd.f32 %v837, %v1083
  %v1088 = vtanh.pop %v1086
  %v1089 = vtanh.pop %v1087
  %v1090 = vpack.c.bf16 %v1089, %v1088
  %1091 = vmatprep.subr.bf16.mxu0 0
  %1092 = vmatpush1.bf16.msra.mxu0 %v993
  %1093 = vmatprep.subr.bf16.mxu0 0
  %1094 = vmatpush1.bf16.msra.mxu0 %v992
  %1095 = vmatprep.subr.bf16.mxu0 0
  %1096 = vmatpush1.bf16.msra.mxu0 %v991
  %1097 = vmatprep.subr.bf16.mxu0 0
  %1098 = vmatpush1.bf16.msra.mxu0 %v990
  %1099 = vmatprep.subr.bf16.mxu0 0
  %1100 = vmatpush1.bf16.msra.mxu0 %v989
  %1101 = vmatprep.subr.bf16.mxu0 0
  %1102 = vmatpush1.bf16.msra.mxu0 %v988
  %1103 = vmatprep.subr.bf16.mxu0 0
  %1104 = vmatpush1.bf16.msra.mxu0 %v987
  %1105 = vmatprep.subr.bf16.mxu0 0
  %1106 = vmatpush1.bf16.msra.mxu0 %v986
  %1107 = vmatprep.subr.bf16.mxu0 0
  %1108 = vmatpush2.bf16.msra.mxu0 0
  %1109 = vmatprep.subr.bf16.mxu0 0
  %1110 = vmatpush2.bf16.msra.mxu0 0
  %1111 = vmatprep.subr.bf16.mxu0 0
  %1112 = vmatpush2.bf16.msra.mxu0 0
  %1113 = vmatprep.subr.bf16.mxu0 0
  %1114 = vmatpush2.bf16.msra.mxu0 0
  %1115 = vmatprep.subr.bf16.mxu0 0
  %1116 = vmatpush2.bf16.msra.mxu0 0
  %1117 = vmatprep.subr.bf16.mxu0 0
  %1118 = vmatpush2.bf16.msra.mxu0 0
  %1119 = vmatprep.subr.bf16.mxu0 0
  %1120 = vmatpush2.bf16.msra.mxu0 0
  %1121 = vmatprep.subr.bf16.mxu0 0
  %1122 = vmatpush2.bf16.msra.mxu0 0
  %1123 = vmatprep.mubr.bf16.mxu0 0
  %1124 = vmatmul.mubr.bf16.gmra.mxu0 %v1090
  %v1125 = vpop.f32.mrf.mxu0
  %v1126 = vadd.f32 %v952, %v1125
  %v1127 = vpop.f32.mrf.mxu0
  %v1128 = vpop.f32.mrf.mxu0
  %v1129 = vadd.f32 %v952, %v1128
  %v1130 = vpop.f32.mrf.mxu0
  %1131 = vdwg.mxu0
  %s1132 = scalar_lea.vmem %s7, 16
  %1133 = vst [vmem:[%s1132] sm:$0xff] %v1126
  %1134 = vst [vmem:[%s1132 + $0x8] sm:$0xff] %v1129
  %1135 = vmatprep.subr.bf16.mxu0 0
  %1136 = vmatpush1.bf16.msra.mxu0 %v893
  %1137 = vmatprep.subr.bf16.mxu0 0
  %1138 = vmatpush1.bf16.msra.mxu0 %v892
  %1139 = vmatprep.subr.bf16.mxu0 0
  %1140 = vmatpush1.bf16.msra.mxu0 %v891
  %1141 = vmatprep.subr.bf16.mxu0 0
  %1142 = vmatpush1.bf16.msra.mxu0 %v890
  %1143 = vmatprep.subr.bf16.mxu0 0
  %1144 = vmatpush1.bf16.msra.mxu0 %v889
  %1145 = vmatprep.subr.bf16.mxu0 0
  %1146 = vmatpush1.bf16.msra.mxu0 %v888
  %1147 = vmatprep.subr.bf16.mxu0 0
  %1148 = vmatpush1.bf16.msra.mxu0 %v887
  %1149 = vmatprep.subr.bf16.mxu0 0
  %1150 = vmatpush1.bf16.msra.mxu0 %v886
  %1151 = vmatprep.subr.bf16.mxu0 0
  %1152 = vmatpush2.bf16.msra.mxu0 0
  %1153 = vmatprep.subr.bf16.mxu0 0
  %1154 = vmatpush2.bf16.msra.mxu0 0
  %1155 = vmatprep.subr.bf16.mxu0 0
  %1156 = vmatpush2.bf16.msra.mxu0 0
  %1157 = vmatprep.subr.bf16.mxu0 0
  %1158 = vmatpush2.bf16.msra.mxu0 0
  %1159 = vmatprep.subr.bf16.mxu0 0
  %1160 = vmatpush2.bf16.msra.mxu0 0
  %1161 = vmatprep.subr.bf16.mxu0 0
  %1162 = vmatpush2.bf16.msra.mxu0 0
  %1163 = vmatprep.subr.bf16.mxu0 0
  %1164 = vmatpush2.bf16.msra.mxu0 0
  %1165 = vmatprep.subr.bf16.mxu0 0
  %1166 = vmatpush2.bf16.msra.mxu0 0
  %1167 = vmatprep.mubr.bf16.mxu0 0
  %1168 = vmatmul.mubr.bf16.gmra.mxu0 %v1090
  %v1169 = vpop.f32.mrf.mxu0
  %v1170 = vadd.f32 0.0, %v1169
  %v1171 = vpop.f32.mrf.mxu0
  %v1172 = vpop.f32.mrf.mxu0
  %v1173 = vadd.f32 0.0, %v1172
  %v1174 = vpop.f32.mrf.mxu0
  %1175 = vdwg.mxu0
  %v1176 = vadd.f32 %v838, %v1170
  %v1177 = vadd.f32 %v839, %v1173
  %v1178 = vtanh.pop %v1176
  %v1179 = vtanh.pop %v1177
  %v1180 = vpack.c.bf16 %v1179, %v1178
  %1181 = vmatprep.subr.bf16.mxu0 0
  %1182 = vmatpush1.bf16.msra.mxu0 %v993
  %1183 = vmatprep.subr.bf16.mxu0 0
  %1184 = vmatpush1.bf16.msra.mxu0 %v992
  %1185 = vmatprep.subr.bf16.mxu0 0
  %1186 = vmatpush1.bf16.msra.mxu0 %v991
  %1187 = vmatprep.subr.bf16.mxu0 0
  %1188 = vmatpush1.bf16.msra.mxu0 %v990
  %1189 = vmatprep.subr.bf16.mxu0 0
  %1190 = vmatpush1.bf16.msra.mxu0 %v989
  %1191 = vmatprep.subr.bf16.mxu0 0
  %1192 = vmatpush1.bf16.msra.mxu0 %v988
  %1193 = vmatprep.subr.bf16.mxu0 0
  %1194 = vmatpush1.bf16.msra.mxu0 %v987
  %1195 = vmatprep.subr.bf16.mxu0 0
  %1196 = vmatpush1.bf16.msra.mxu0 %v986
  %1197 = vmatprep.subr.bf16.mxu0 0
  %1198 = vmatpush2.bf16.msra.mxu0 0
  %1199 = vmatprep.subr.bf16.mxu0 0
  %1200 = vmatpush2.bf16.msra.mxu0 0
  %1201 = vmatprep.subr.bf16.mxu0 0
  %1202 = vmatpush2.bf16.msra.mxu0 0
  %1203 = vmatprep.subr.bf16.mxu0 0
  %1204 = vmatpush2.bf16.msra.mxu0 0
  %1205 = vmatprep.subr.bf16.mxu0 0
  %1206 = vmatpush2.bf16.msra.mxu0 0
  %1207 = vmatprep.subr.bf16.mxu0 0
  %1208 = vmatpush2.bf16.msra.mxu0 0
  %1209 = vmatprep.subr.bf16.mxu0 0
  %1210 = vmatpush2.bf16.msra.mxu0 0
  %1211 = vmatprep.subr.bf16.mxu0 0
  %1212 = vmatpush2.bf16.msra.mxu0 0
  %1213 = vmatprep.mubr.bf16.mxu0 0
  %1214 = vmatmul.mubr.bf16.gmra.mxu0 %v1180
  %v1215 = vpop.f32.mrf.mxu0
  %v1216 = vadd.f32 %v952, %v1215
  %v1217 = vpop.f32.mrf.mxu0
  %v1218 = vpop.f32.mrf.mxu0
  %v1219 = vadd.f32 %v952, %v1218
  %v1220 = vpop.f32.mrf.mxu0
  %1221 = vdwg.mxu0
  %s1222 = scalar_lea.vmem %s7, 32
  %1223 = vst [vmem:[%s1222] sm:$0xff] %v1216
  %1224 = vst [vmem:[%s1222 + $0x8] sm:$0xff] %v1219
  %1225 = vmatprep.subr.bf16.mxu0 0
  %1226 = vmatpush1.bf16.msra.mxu0 %v893
  %1227 = vmatprep.subr.bf16.mxu0 0
  %1228 = vmatpush1.bf16.msra.mxu0 %v892
  %1229 = vmatprep.subr.bf16.mxu0 0
  %1230 = vmatpush1.bf16.msra.mxu0 %v891
  %1231 = vmatprep.subr.bf16.mxu0 0
  %1232 = vmatpush1.bf16.msra.mxu0 %v890
  %1233 = vmatprep.subr.bf16.mxu0 0
  %1234 = vmatpush1.bf16.msra.mxu0 %v889
  %1235 = vmatprep.subr.bf16.mxu0 0
  %1236 = vmatpush1.bf16.msra.mxu0 %v888
  %1237 = vmatprep.subr.bf16.mxu0 0
  %1238 = vmatpush1.bf16.msra.mxu0 %v887
  %1239 = vmatprep.subr.bf16.mxu0 0
  %1240 = vmatpush1.bf16.msra.mxu0 %v886
  %1241 = vmatprep.subr.bf16.mxu0 0
  %1242 = vmatpush2.bf16.msra.mxu0 0
  %1243 = vmatprep.subr.bf16.mxu0 0
  %1244 = vmatpush2.bf16.msra.mxu0 0
  %1245 = vmatprep.subr.bf16.mxu0 0
  %1246 = vmatpush2.bf16.msra.mxu0 0
  %1247 = vmatprep.subr.bf16.mxu0 0
  %1248 = vmatpush2.bf16.msra.mxu0 0
  %1249 = vmatprep.subr.bf16.mxu0 0
  %1250 = vmatpush2.bf16.msra.mxu0 0
  %1251 = vmatprep.subr.bf16.mxu0 0
  %1252 = vmatpush2.bf16.msra.mxu0 0
  %1253 = vmatprep.subr.bf16.mxu0 0
  %1254 = vmatpush2.bf16.msra.mxu0 0
  %1255 = vmatprep.subr.bf16.mxu0 0
  %1256 = vmatpush2.bf16.msra.mxu0 0
  %1257 = vmatprep.mubr.bf16.mxu0 0
  %1258 = vmatmul.mubr.bf16.gmra.mxu0 %v1180
  %v1259 = vpop.f32.mrf.mxu0
  %v1260 = vadd.f32 0.0, %v1259
  %v1261 = vpop.f32.mrf.mxu0
  %v1262 = vpop.f32.mrf.mxu0
  %v1263 = vadd.f32 0.0, %v1262
  %v1264 = vpop.f32.mrf.mxu0
  %1265 = vdwg.mxu0
  %v1266 = vadd.f32 %v840, %v1260
  %v1267 = vadd.f32 %v841, %v1263
  %v1268 = vtanh.pop %v1266
  %v1269 = vtanh.pop %v1267
  %v1270 = vpack.c.bf16 %v1269, %v1268
  %1271 = vmatprep.subr.bf16.mxu0 0
  %1272 = vmatpush1.bf16.msra.mxu0 %v993
  %1273 = vmatprep.subr.bf16.mxu0 0
  %1274 = vmatpush1.bf16.msra.mxu0 %v992
  %1275 = vmatprep.subr.bf16.mxu0 0
  %1276 = vmatpush1.bf16.msra.mxu0 %v991
  %1277 = vmatprep.subr.bf16.mxu0 0
  %1278 = vmatpush1.bf16.msra.mxu0 %v990
  %1279 = vmatprep.subr.bf16.mxu0 0
  %1280 = vmatpush1.bf16.msra.mxu0 %v989
  %1281 = vmatprep.subr.bf16.mxu0 0
  %1282 = vmatpush1.bf16.msra.mxu0 %v988
  %1283 = vmatprep.subr.bf16.mxu0 0
  %1284 = vmatpush1.bf16.msra.mxu0 %v987
  %1285 = vmatprep.subr.bf16.mxu0 0
  %1286 = vmatpush1.bf16.msra.mxu0 %v986
  %1287 = vmatprep.subr.bf16.mxu0 0
  %1288 = vmatpush2.bf16.msra.mxu0 0
  %1289 = vmatprep.subr.bf16.mxu0 0
  %1290 = vmatpush2.bf16.msra.mxu0 0
  %1291 = vmatprep.subr.bf16.mxu0 0
  %1292 = vmatpush2.bf16.msra.mxu0 0
  %1293 = vmatprep.subr.bf16.mxu0 0
  %1294 = vmatpush2.bf16.msra.mxu0 0
  %1295 = vmatprep.subr.bf16.mxu0 0
  %1296 = vmatpush2.bf16.msra.mxu0 0
  %1297 = vmatprep.subr.bf16.mxu0 0
  %1298 = vmatpush2.bf16.msra.mxu0 0
  %1299 = vmatprep.subr.bf16.mxu0 0
  %1300 = vmatpush2.bf16.msra.mxu0 0
  %1301 = vmatprep.subr.bf16.mxu0 0
  %1302 = vmatpush2.bf16.msra.mxu0 0
  %1303 = vmatprep.mubr.bf16.mxu0 0
  %1304 = vmatmul.mubr.bf16.gmra.mxu0 %v1270
  %v1305 = vpop.f32.mrf.mxu0
  %v1306 = vadd.f32 %v952, %v1305
  %v1307 = vpop.f32.mrf.mxu0
  %v1308 = vpop.f32.mrf.mxu0
  %v1309 = vadd.f32 %v952, %v1308
  %v1310 = vpop.f32.mrf.mxu0
  %1311 = vdwg.mxu0
  %s1312 = scalar_lea.vmem %s7, 48
  %1313 = vst [vmem:[%s1312] sm:$0xff] %v1306
  %1314 = vst [vmem:[%s1312 + $0x8] sm:$0xff] %v1309
  %1315 = vmatprep.subr.bf16.mxu0 0
  %1316 = vmatpush1.bf16.msra.mxu0 %v893
  %1317 = vmatprep.subr.bf16.mxu0 0
  %1318 = vmatpush1.bf16.msra.mxu0 %v892
  %1319 = vmatprep.subr.bf16.mxu0 0
  %1320 = vmatpush1.bf16.msra.mxu0 %v891
  %1321 = vmatprep.subr.bf16.mxu0 0
  %1322 = vmatpush1.bf16.msra.mxu0 %v890
  %1323 = vmatprep.subr.bf16.mxu0 0
  %1324 = vmatpush1.bf16.msra.mxu0 %v889
  %1325 = vmatprep.subr.bf16.mxu0 0
  %1326 = vmatpush1.bf16.msra.mxu0 %v888
  %1327 = vmatprep.subr.bf16.mxu0 0
  %1328 = vmatpush1.bf16.msra.mxu0 %v887
  %1329 = vmatprep.subr.bf16.mxu0 0
  %1330 = vmatpush1.bf16.msra.mxu0 %v886
  %1331 = vmatprep.subr.bf16.mxu0 0
  %1332 = vmatpush2.bf16.msra.mxu0 0
  %1333 = vmatprep.subr.bf16.mxu0 0
  %1334 = vmatpush2.bf16.msra.mxu0 0
  %1335 = vmatprep.subr.bf16.mxu0 0
  %1336 = vmatpush2.bf16.msra.mxu0 0
  %1337 = vmatprep.subr.bf16.mxu0 0
  %1338 = vmatpush2.bf16.msra.mxu0 0
  %1339 = vmatprep.subr.bf16.mxu0 0
  %1340 = vmatpush2.bf16.msra.mxu0 0
  %1341 = vmatprep.subr.bf16.mxu0 0
  %1342 = vmatpush2.bf16.msra.mxu0 0
  %1343 = vmatprep.subr.bf16.mxu0 0
  %1344 = vmatpush2.bf16.msra.mxu0 0
  %1345 = vmatprep.subr.bf16.mxu0 0
  %1346 = vmatpush2.bf16.msra.mxu0 0
  %1347 = vmatprep.mubr.bf16.mxu0 0
  %1348 = vmatmul.mubr.bf16.gmra.mxu0 %v1270
  %v1349 = vpop.f32.mrf.mxu0
  %v1350 = vadd.f32 0.0, %v1349
  %v1351 = vpop.f32.mrf.mxu0
  %v1352 = vpop.f32.mrf.mxu0
  %v1353 = vadd.f32 0.0, %v1352
  %v1354 = vpop.f32.mrf.mxu0
  %1355 = vdwg.mxu0
  %v1356 = vadd.f32 %v842, %v1350
  %v1357 = vadd.f32 %v843, %v1353
  %v1358 = vtanh.pop %v1356
  %v1359 = vtanh.pop %v1357
  %v1360 = vpack.c.bf16 %v1359, %v1358
  %1361 = vmatprep.subr.bf16.mxu0 0
  %1362 = vmatpush1.bf16.msra.mxu0 %v993
  %1363 = vmatprep.subr.bf16.mxu0 0
  %1364 = vmatpush1.bf16.msra.mxu0 %v992
  %1365 = vmatprep.subr.bf16.mxu0 0
  %1366 = vmatpush1.bf16.msra.mxu0 %v991
  %1367 = vmatprep.subr.bf16.mxu0 0
  %1368 = vmatpush1.bf16.msra.mxu0 %v990
  %1369 = vmatprep.subr.bf16.mxu0 0
  %1370 = vmatpush1.bf16.msra.mxu0 %v989
  %1371 = vmatprep.subr.bf16.mxu0 0
  %1372 = vmatpush1.bf16.msra.mxu0 %v988
  %1373 = vmatprep.subr.bf16.mxu0 0
  %1374 = vmatpush1.bf16.msra.mxu0 %v987
  %1375 = vmatprep.subr.bf16.mxu0 0
  %1376 = vmatpush1.bf16.msra.mxu0 %v986
  %1377 = vmatprep.subr.bf16.mxu0 0
  %1378 = vmatpush2.bf16.msra.mxu0 0
  %1379 = vmatprep.subr.bf16.mxu0 0
  %1380 = vmatpush2.bf16.msra.mxu0 0
  %1381 = vmatprep.subr.bf16.mxu0 0
  %1382 = vmatpush2.bf16.msra.mxu0 0
  %1383 = vmatprep.subr.bf16.mxu0 0
  %1384 = vmatpush2.bf16.msra.mxu0 0
  %1385 = vmatprep.subr.bf16.mxu0 0
  %1386 = vmatpush2.bf16.msra.mxu0 0
  %1387 = vmatprep.subr.bf16.mxu0 0
  %1388 = vmatpush2.bf16.msra.mxu0 0
  %1389 = vmatprep.subr.bf16.mxu0 0
  %1390 = vmatpush2.bf16.msra.mxu0 0
  %1391 = vmatprep.subr.bf16.mxu0 0
  %1392 = vmatpush2.bf16.msra.mxu0 0
  %1393 = vmatprep.mubr.bf16.mxu0 0
  %1394 = vmatmul.mubr.bf16.gmra.mxu0 %v1360
  %v1395 = vpop.f32.mrf.mxu0
  %v1396 = vadd.f32 %v952, %v1395
  %v1397 = vpop.f32.mrf.mxu0
  %v1398 = vpop.f32.mrf.mxu0
  %v1399 = vadd.f32 %v952, %v1398
  %v1400 = vpop.f32.mrf.mxu0
  %1401 = vdwg.mxu0
  %s1402 = scalar_lea.vmem %s7, 64
  %1403 = vst [vmem:[%s1402] sm:$0xff] %v1396
  %1404 = vst [vmem:[%s1402 + $0x8] sm:$0xff] %v1399
  %1405 = vmatprep.subr.bf16.mxu0 0
  %1406 = vmatpush1.bf16.msra.mxu0 %v893
  %1407 = vmatprep.subr.bf16.mxu0 0
  %1408 = vmatpush1.bf16.msra.mxu0 %v892
  %1409 = vmatprep.subr.bf16.mxu0 0
  %1410 = vmatpush1.bf16.msra.mxu0 %v891
  %1411 = vmatprep.subr.bf16.mxu0 0
  %1412 = vmatpush1.bf16.msra.mxu0 %v890
  %1413 = vmatprep.subr.bf16.mxu0 0
  %1414 = vmatpush1.bf16.msra.mxu0 %v889
  %1415 = vmatprep.subr.bf16.mxu0 0
  %1416 = vmatpush1.bf16.msra.mxu0 %v888
  %1417 = vmatprep.subr.bf16.mxu0 0
  %1418 = vmatpush1.bf16.msra.mxu0 %v887
  %1419 = vmatprep.subr.bf16.mxu0 0
  %1420 = vmatpush1.bf16.msra.mxu0 %v886
  %1421 = vmatprep.subr.bf16.mxu0 0
  %1422 = vmatpush2.bf16.msra.mxu0 0
  %1423 = vmatprep.subr.bf16.mxu0 0
  %1424 = vmatpush2.bf16.msra.mxu0 0
  %1425 = vmatprep.subr.bf16.mxu0 0
  %1426 = vmatpush2.bf16.msra.mxu0 0
  %1427 = vmatprep.subr.bf16.mxu0 0
  %1428 = vmatpush2.bf16.msra.mxu0 0
  %1429 = vmatprep.subr.bf16.mxu0 0
  %1430 = vmatpush2.bf16.msra.mxu0 0
  %1431 = vmatprep.subr.bf16.mxu0 0
  %1432 = vmatpush2.bf16.msra.mxu0 0
  %1433 = vmatprep.subr.bf16.mxu0 0
  %1434 = vmatpush2.bf16.msra.mxu0 0
  %1435 = vmatprep.subr.bf16.mxu0 0
  %1436 = vmatpush2.bf16.msra.mxu0 0
  %1437 = vmatprep.mubr.bf16.mxu0 0
  %1438 = vmatmul.mubr.bf16.gmra.mxu0 %v1360
  %v1439 = vpop.f32.mrf.mxu0
  %v1440 = vadd.f32 0.0, %v1439
  %v1441 = vpop.f32.mrf.mxu0
  %v1442 = vpop.f32.mrf.mxu0
  %v1443 = vadd.f32 0.0, %v1442
  %v1444 = vpop.f32.mrf.mxu0
  %1445 = vdwg.mxu0
  %v1446 = vadd.f32 %v844, %v1440
  %v1447 = vadd.f32 %v845, %v1443
  %v1448 = vtanh.pop %v1446
  %v1449 = vtanh.pop %v1447
  %v1450 = vpack.c.bf16 %v1449, %v1448
  %1451 = vmatprep.subr.bf16.mxu0 0
  %1452 = vmatpush1.bf16.msra.mxu0 %v993
  %1453 = vmatprep.subr.bf16.mxu0 0
  %1454 = vmatpush1.bf16.msra.mxu0 %v992
  %1455 = vmatprep.subr.bf16.mxu0 0
  %1456 = vmatpush1.bf16.msra.mxu0 %v991
  %1457 = vmatprep.subr.bf16.mxu0 0
  %1458 = vmatpush1.bf16.msra.mxu0 %v990
  %1459 = vmatprep.subr.bf16.mxu0 0
  %1460 = vmatpush1.bf16.msra.mxu0 %v989
  %1461 = vmatprep.subr.bf16.mxu0 0
  %1462 = vmatpush1.bf16.msra.mxu0 %v988
  %1463 = vmatprep.subr.bf16.mxu0 0
  %1464 = vmatpush1.bf16.msra.mxu0 %v987
  %1465 = vmatprep.subr.bf16.mxu0 0
  %1466 = vmatpush1.bf16.msra.mxu0 %v986
  %1467 = vmatprep.subr.bf16.mxu0 0
  %1468 = vmatpush2.bf16.msra.mxu0 0
  %1469 = vmatprep.subr.bf16.mxu0 0
  %1470 = vmatpush2.bf16.msra.mxu0 0
  %1471 = vmatprep.subr.bf16.mxu0 0
  %1472 = vmatpush2.bf16.msra.mxu0 0
  %1473 = vmatprep.subr.bf16.mxu0 0
  %1474 = vmatpush2.bf16.msra.mxu0 0
  %1475 = vmatprep.subr.bf16.mxu0 0
  %1476 = vmatpush2.bf16.msra.mxu0 0
  %1477 = vmatprep.subr.bf16.mxu0 0
  %1478 = vmatpush2.bf16.msra.mxu0 0
  %1479 = vmatprep.subr.bf16.mxu0 0
  %1480 = vmatpush2.bf16.msra.mxu0 0
  %1481 = vmatprep.subr.bf16.mxu0 0
  %1482 = vmatpush2.bf16.msra.mxu0 0
  %1483 = vmatprep.mubr.bf16.mxu0 0
  %1484 = vmatmul.mubr.bf16.gmra.mxu0 %v1450
  %v1485 = vpop.f32.mrf.mxu0
  %v1486 = vadd.f32 %v952, %v1485
  %v1487 = vpop.f32.mrf.mxu0
  %v1488 = vpop.f32.mrf.mxu0
  %v1489 = vadd.f32 %v952, %v1488
  %v1490 = vpop.f32.mrf.mxu0
  %1491 = vdwg.mxu0
  %s1492 = scalar_lea.vmem %s7, 80
  %1493 = vst [vmem:[%s1492] sm:$0xff] %v1486
  %1494 = vst [vmem:[%s1492 + $0x8] sm:$0xff] %v1489
  %1495 = vmatprep.subr.bf16.mxu0 0
  %1496 = vmatpush1.bf16.msra.mxu0 %v893
  %1497 = vmatprep.subr.bf16.mxu0 0
  %1498 = vmatpush1.bf16.msra.mxu0 %v892
  %1499 = vmatprep.subr.bf16.mxu0 0
  %1500 = vmatpush1.bf16.msra.mxu0 %v891
  %1501 = vmatprep.subr.bf16.mxu0 0
  %1502 = vmatpush1.bf16.msra.mxu0 %v890
  %1503 = vmatprep.subr.bf16.mxu0 0
  %1504 = vmatpush1.bf16.msra.mxu0 %v889
  %1505 = vmatprep.subr.bf16.mxu0 0
  %1506 = vmatpush1.bf16.msra.mxu0 %v888
  %1507 = vmatprep.subr.bf16.mxu0 0
  %1508 = vmatpush1.bf16.msra.mxu0 %v887
  %1509 = vmatprep.subr.bf16.mxu0 0
  %1510 = vmatpush1.bf16.msra.mxu0 %v886
  %1511 = vmatprep.subr.bf16.mxu0 0
  %1512 = vmatpush2.bf16.msra.mxu0 0
  %1513 = vmatprep.subr.bf16.mxu0 0
  %1514 = vmatpush2.bf16.msra.mxu0 0
  %1515 = vmatprep.subr.bf16.mxu0 0
  %1516 = vmatpush2.bf16.msra.mxu0 0
  %1517 = vmatprep.subr.bf16.mxu0 0
  %1518 = vmatpush2.bf16.msra.mxu0 0
  %1519 = vmatprep.subr.bf16.mxu0 0
  %1520 = vmatpush2.bf16.msra.mxu0 0
  %1521 = vmatprep.subr.bf16.mxu0 0
  %1522 = vmatpush2.bf16.msra.mxu0 0
  %1523 = vmatprep.subr.bf16.mxu0 0
  %1524 = vmatpush2.bf16.msra.mxu0 0
  %1525 = vmatprep.subr.bf16.mxu0 0
  %1526 = vmatpush2.bf16.msra.mxu0 0
  %1527 = vmatprep.mubr.bf16.mxu0 0
  %1528 = vmatmul.mubr.bf16.gmra.mxu0 %v1450
  %v1529 = vpop.f32.mrf.mxu0
  %v1530 = vadd.f32 0.0, %v1529
  %v1531 = vpop.f32.mrf.mxu0
  %v1532 = vpop.f32.mrf.mxu0
  %v1533 = vadd.f32 0.0, %v1532
  %v1534 = vpop.f32.mrf.mxu0
  %1535 = vdwg.mxu0
  %v1536 = vadd.f32 %v846, %v1530
  %v1537 = vadd.f32 %v847, %v1533
  %v1538 = vtanh.pop %v1536
  %v1539 = vtanh.pop %v1537
  %v1540 = vpack.c.bf16 %v1539, %v1538
  %1541 = vmatprep.subr.bf16.mxu0 0
  %1542 = vmatpush1.bf16.msra.mxu0 %v993
  %1543 = vmatprep.subr.bf16.mxu0 0
  %1544 = vmatpush1.bf16.msra.mxu0 %v992
  %1545 = vmatprep.subr.bf16.mxu0 0
  %1546 = vmatpush1.bf16.msra.mxu0 %v991
  %1547 = vmatprep.subr.bf16.mxu0 0
  %1548 = vmatpush1.bf16.msra.mxu0 %v990
  %1549 = vmatprep.subr.bf16.mxu0 0
  %1550 = vmatpush1.bf16.msra.mxu0 %v989
  %1551 = vmatprep.subr.bf16.mxu0 0
  %1552 = vmatpush1.bf16.msra.mxu0 %v988
  %1553 = vmatprep.subr.bf16.mxu0 0
  %1554 = vmatpush1.bf16.msra.mxu0 %v987
  %1555 = vmatprep.subr.bf16.mxu0 0
  %1556 = vmatpush1.bf16.msra.mxu0 %v986
  %1557 = vmatprep.subr.bf16.mxu0 0
  %1558 = vmatpush2.bf16.msra.mxu0 0
  %1559 = vmatprep.subr.bf16.mxu0 0
  %1560 = vmatpush2.bf16.msra.mxu0 0
  %1561 = vmatprep.subr.bf16.mxu0 0
  %1562 = vmatpush2.bf16.msra.mxu0 0
  %1563 = vmatprep.subr.bf16.mxu0 0
  %1564 = vmatpush2.bf16.msra.mxu0 0
  %1565 = vmatprep.subr.bf16.mxu0 0
  %1566 = vmatpush2.bf16.msra.mxu0 0
  %1567 = vmatprep.subr.bf16.mxu0 0
  %1568 = vmatpush2.bf16.msra.mxu0 0
  %1569 = vmatprep.subr.bf16.mxu0 0
  %1570 = vmatpush2.bf16.msra.mxu0 0
  %1571 = vmatprep.subr.bf16.mxu0 0
  %1572 = vmatpush2.bf16.msra.mxu0 0
  %1573 = vmatprep.mubr.bf16.mxu0 0
  %1574 = vmatmul.mubr.bf16.gmra.mxu0 %v1540
  %v1575 = vpop.f32.mrf.mxu0
  %v1576 = vadd.f32 %v952, %v1575
  %v1577 = vpop.f32.mrf.mxu0
  %v1578 = vpop.f32.mrf.mxu0
  %v1579 = vadd.f32 %v952, %v1578
  %v1580 = vpop.f32.mrf.mxu0
  %1581 = vdwg.mxu0
  %s1582 = scalar_lea.vmem %s7, 96
  %1583 = vst [vmem:[%s1582] sm:$0xff] %v1576
  %1584 = vst [vmem:[%s1582 + $0x8] sm:$0xff] %v1579
  %1585 = vmatprep.subr.bf16.mxu0 0
  %1586 = vmatpush1.bf16.msra.mxu0 %v893
  %1587 = vmatprep.subr.bf16.mxu0 0
  %1588 = vmatpush1.bf16.msra.mxu0 %v892
  %1589 = vmatprep.subr.bf16.mxu0 0
  %1590 = vmatpush1.bf16.msra.mxu0 %v891
  %1591 = vmatprep.subr.bf16.mxu0 0
  %1592 = vmatpush1.bf16.msra.mxu0 %v890
  %1593 = vmatprep.subr.bf16.mxu0 0
  %1594 = vmatpush1.bf16.msra.mxu0 %v889
  %1595 = vmatprep.subr.bf16.mxu0 0
  %1596 = vmatpush1.bf16.msra.mxu0 %v888
  %1597 = vmatprep.subr.bf16.mxu0 0
  %1598 = vmatpush1.bf16.msra.mxu0 %v887
  %1599 = vmatprep.subr.bf16.mxu0 0
  %1600 = vmatpush1.bf16.msra.mxu0 %v886
  %1601 = vmatprep.subr.bf16.mxu0 0
  %1602 = vmatpush2.bf16.msra.mxu0 0
  %1603 = vmatprep.subr.bf16.mxu0 0
  %1604 = vmatpush2.bf16.msra.mxu0 0
  %1605 = vmatprep.subr.bf16.mxu0 0
  %1606 = vmatpush2.bf16.msra.mxu0 0
  %1607 = vmatprep.subr.bf16.mxu0 0
  %1608 = vmatpush2.bf16.msra.mxu0 0
  %1609 = vmatprep.subr.bf16.mxu0 0
  %1610 = vmatpush2.bf16.msra.mxu0 0
  %1611 = vmatprep.subr.bf16.mxu0 0
  %1612 = vmatpush2.bf16.msra.mxu0 0
  %1613 = vmatprep.subr.bf16.mxu0 0
  %1614 = vmatpush2.bf16.msra.mxu0 0
  %1615 = vmatprep.subr.bf16.mxu0 0
  %1616 = vmatpush2.bf16.msra.mxu0 0
  %1617 = vmatprep.mubr.bf16.mxu0 0
  %1618 = vmatmul.mubr.bf16.gmra.mxu0 %v1540
  %v1619 = vpop.f32.mrf.mxu0
  %v1620 = vadd.f32 0.0, %v1619
  %v1621 = vpop.f32.mrf.mxu0
  %v1622 = vpop.f32.mrf.mxu0
  %v1623 = vadd.f32 0.0, %v1622
  %v1624 = vpop.f32.mrf.mxu0
  %1625 = vdwg.mxu0
  %v1626 = vadd.f32 %v848, %v1620
  %v1627 = vadd.f32 %v849, %v1623
  %v1628 = vtanh.pop %v1626
  %v1629 = vtanh.pop %v1627
  %v1630 = vpack.c.bf16 %v1629, %v1628
  %1631 = vmatprep.subr.bf16.mxu0 0
  %1632 = vmatpush1.bf16.msra.mxu0 %v993
  %1633 = vmatprep.subr.bf16.mxu0 0
  %1634 = vmatpush1.bf16.msra.mxu0 %v992
  %1635 = vmatprep.subr.bf16.mxu0 0
  %1636 = vmatpush1.bf16.msra.mxu0 %v991
  %1637 = vmatprep.subr.bf16.mxu0 0
  %1638 = vmatpush1.bf16.msra.mxu0 %v990
  %1639 = vmatprep.subr.bf16.mxu0 0
  %1640 = vmatpush1.bf16.msra.mxu0 %v989
  %1641 = vmatprep.subr.bf16.mxu0 0
  %1642 = vmatpush1.bf16.msra.mxu0 %v988
  %1643 = vmatprep.subr.bf16.mxu0 0
  %1644 = vmatpush1.bf16.msra.mxu0 %v987
  %1645 = vmatprep.subr.bf16.mxu0 0
  %1646 = vmatpush1.bf16.msra.mxu0 %v986
  %1647 = vmatprep.subr.bf16.mxu0 0
  %1648 = vmatpush2.bf16.msra.mxu0 0
  %1649 = vmatprep.subr.bf16.mxu0 0
  %1650 = vmatpush2.bf16.msra.mxu0 0
  %1651 = vmatprep.subr.bf16.mxu0 0
  %1652 = vmatpush2.bf16.msra.mxu0 0
  %1653 = vmatprep.subr.bf16.mxu0 0
  %1654 = vmatpush2.bf16.msra.mxu0 0
  %1655 = vmatprep.subr.bf16.mxu0 0
  %1656 = vmatpush2.bf16.msra.mxu0 0
  %1657 = vmatprep.subr.bf16.mxu0 0
  %1658 = vmatpush2.bf16.msra.mxu0 0
  %1659 = vmatprep.subr.bf16.mxu0 0
  %1660 = vmatpush2.bf16.msra.mxu0 0
  %1661 = vmatprep.subr.bf16.mxu0 0
  %1662 = vmatpush2.bf16.msra.mxu0 0
  %1663 = vmatprep.mubr.bf16.mxu0 0
  %1664 = vmatmul.mubr.bf16.gmra.mxu0 %v1630
  %v1665 = vpop.f32.mrf.mxu0
  %v1666 = vadd.f32 %v952, %v1665
  %v1667 = vpop.f32.mrf.mxu0
  %v1668 = vpop.f32.mrf.mxu0
  %v1669 = vadd.f32 %v952, %v1668
  %v1670 = vpop.f32.mrf.mxu0
  %1671 = vdwg.mxu0
  %s1672 = scalar_lea.vmem %s7, 112
  %1673 = vst [vmem:[%s1672] sm:$0xff] %v1666
  %1674 = vst [vmem:[%s1672 + $0x8] sm:$0xff] %v1669
  %1675 = vst [vmem:[%s850] sm:$0xff] %v1628
  %1676 = vst [vmem:[%s850 + $0x8] sm:$0xff] %v1629
  // Predicated region
  $region34: #{forward.1} parent=0 // pred_check
    %p1677 = pneg %p29
  $region35: #{forward.1} parent=0 // pred_check_branch
    %1679 = sbr.rel (%p1677) target = $region37
  $region36: #{forward.1} parent=0 // pred_region
    %v1680 = vld [vmem:[#allocation2] sm:$0xff]
    %v1681 = vld [vmem:[#allocation2 + $0x8] sm:$0xff]
    %v1682 = vld [vmem:[#allocation2 + $0x10] sm:$0xff]
    %v1683 = vld [vmem:[#allocation2 + $0x18] sm:$0xff]
    %1684 = vst [vmem:[%s8] sm:$0xff] %v1680
    %1685 = vst [vmem:[%s8 + $0x8] sm:$0xff] %v1681
    %1686 = vst [vmem:[%s8 + $0x10] sm:$0xff] %v1682
    %1687 = vst [vmem:[%s8 + $0x18] sm:$0xff] %v1683
  $region37: #{forward.1} parent=0 // pred_fallthru
    _
  // Predicated region
  $region38: #{forward.1} parent=0 // pred_check
    _
  $region39: #{forward.1} parent=0 // pred_check_branch
    %1689 = sbr.rel (0) target = $region41
  $region40: #{forward.1} parent=0 // pred_region
    _
  $region41: #{forward.1} parent=0 // pred_fallthru
    _
  // Predicated region
  $region42: #{forward.1} parent=0 // pred_check
    _
  $region43: #{forward.1} parent=0 // pred_check_branch
    %1691 = sbr.rel (0) target = $region45
  $region44: #{forward.1} parent=0 // pred_region
    _
  $region45: #{forward.1} parent=0 // pred_fallthru
    _
  // Predicated region
  $region46: #{forward.1} parent=0 // pred_check
    _
  $region47: #{forward.1} parent=0 // pred_check_branch
    %1693 = sbr.rel (0) target = $region49
  $region48: #{forward.1} parent=0 // pred_region
    _
  $region49: #{forward.1} parent=0 // pred_fallthru
    _
  // Predicated region
  $region50: #{forward.1} parent=0 // pred_check
    _
  $region51: #{forward.1} parent=0 // pred_check_branch
    %1695 = sbr.rel (0) target = $region53
  $region52: #{forward.1} parent=0 // pred_region
    _
  $region53: #{forward.1} parent=0 // pred_fallthru
    _

</llo_original>
